<compile_context>
chip_gen: v6e
topology: v6e:2x2x1
jax: 0.10.0
libtpu: 0.0.40
codegen_flags: <defaults>
</compile_context>

<pallas_src>
import functools

import jax
import jax.numpy as jnp
from jax.experimental import pallas as pl
from jax.experimental.pallas import tpu as pltpu


def _last2d_kernel(patch_ref, mask_ref, w1_ref, s1_ref, b1_ref,
                   w2_ref, s2_ref, b2_ref, w3_ref, b3_ref, o_ref,
                   *, H, W, cout):
    """One batch element, everything in (C, flat-spatial) layout.

    patch_ref : (9*cin, L)  bf16  im2col of the pad-2 input on the extended
                                   (Hp, Wp) = (H+2, W+2) grid, L = Hp*Wp
    mask_ref  : (1, L)      f32   1.0 on the interior of the extended grid
    w1_ref    : (hid, 9*cin) bf16 ; w2_ref : (hid, 9*hid) bf16
    w3_ref    : (cout, hid)  bf16
    s*/b*     : folded BN scale/shift, (hid, 1) f32 ; b3 (cout, 1) f32
    o_ref     : (cout, L)    f32   softmax probs on the extended grid
                                   (border columns are don't-care, cropped
                                   by the wrapper)
    """
    Wp = W + 2
    L = (H + 2) * Wp
    halo = Wp + 1                                   # max |flat shift| for 3x3

    # ---- conv1 (3x3, pad=1) as a single K=9*cin matmul + BN + ReLU --------
    acc1 = jnp.dot(w1_ref[...], patch_ref[...],
                   preferred_element_type=jnp.float32)          # (hid, L) f32
    h1 = jnp.maximum(acc1 * s1_ref[...] + b1_ref[...], 0.0)
    # zero the 1-pixel border of the extended grid -> acts as conv2's zero pad
    h1 = (h1 * mask_ref[...]).astype(jnp.bfloat16)

    # ---- conv2 (3x3, pad=1): in-kernel im2col -> single K=9*hid matmul ----
    hid = h1.shape[0]
    zpad = jnp.zeros((hid, halo), jnp.bfloat16)
    h1p = jnp.concatenate([zpad, h1, zpad], axis=1)             # (hid, L+2*halo)
    cols = [h1p[:, halo + dy * Wp + dx: halo + dy * Wp + dx + L]
            for dy in (-1, 0, 1) for dx in (-1, 0, 1)]
    im2 = jnp.concatenate(cols, axis=0)                         # (9*hid, L)
    acc2 = jnp.dot(w2_ref[...], im2,
                   preferred_element_type=jnp.float32)          # (hid, L) f32
    h2 = jnp.maximum(acc2 * s2_ref[...] + b2_ref[...], 0.0)

    # ---- conv3 (1x1) + softmax over the channel (sublane) axis ------------
    logits = jnp.dot(w3_ref[...], h2.astype(jnp.bfloat16),
                     preferred_element_type=jnp.float32) + b3_ref[...]  # (cout,L)
    m = logits[0:1, :]
    for i in range(1, cout):                       # cout is tiny & static
        m = jnp.maximum(m, logits[i:i + 1, :])
    e = jnp.exp(logits - m)
    den = e[0:1, :]
    for i in range(1, cout):
        den = den + e[i:i + 1, :]
    o_ref[...] = e * pl.reciprocal(den, approx=True)


def _fold_bn(conv_bias, gamma, beta, mean, var, eps=1e-5):
    scale = gamma / jnp.sqrt(var + eps)
    shift = conv_bias * scale + beta - mean * scale
    return scale.reshape(-1, 1), shift.reshape(-1, 1)


def last_2d_forward(x_nchw, p):
    """x_nchw: (N, Cin, H, W) float32.  Returns (N, Cout, H, W) softmax probs."""
    N, cin, H, W = x_nchw.shape
    hid = p["w1"].shape[-1]
    cout = p["w3"].shape[-1]
    Hp, Wp = H + 2, W + 2
    L = Hp * Wp

    # im2col for conv1 on the extended (Hp, Wp) output grid (input pad = 2).
    x = x_nchw.astype(jnp.float32)
    xp2 = jnp.pad(x, ((0, 0), (0, 0), (2, 2), (2, 2)))
    cols = [xp2[:, :, ky:ky + Hp, kx:kx + Wp]
            for ky in range(3) for kx in range(3)]
    patches = (jnp.stack(cols, axis=1)                  # (N, 9, cin, Hp, Wp)
               .reshape(N, 9 * cin, L).astype(jnp.bfloat16))

    # interior mask of the extended grid (flattened, 1 lane-row).
    ri = jnp.arange(Hp)[:, None]
    ci = jnp.arange(Wp)[None, :]
    mask = (((ri >= 1) & (ri <= H) & (ci >= 1) & (ci <= W))
            .astype(jnp.float32).reshape(1, L))

    # weights in (Cout, K) matrix form, bf16 for the MXU.
    w1m = p["w1"].reshape(9 * cin, hid).T.astype(jnp.bfloat16)   # (hid, 9*cin)
    w2m = p["w2"].reshape(9 * hid, hid).T.astype(jnp.bfloat16)   # (hid, 9*hid)
    w3m = p["w3"].reshape(hid, cout).T.astype(jnp.bfloat16)      # (cout, hid)

    s1, b1f = _fold_bn(p["b1"], p["g1"], p["be1"], p["m1"], p["v1"])
    s2, b2f = _fold_bn(p["b2"], p["g2"], p["be2"], p["m2"], p["v2"])
    b3 = p["b3"].reshape(cout, 1)

    kernel = functools.partial(_last2d_kernel, H=H, W=W, cout=cout)

    out_ext = pl.pallas_call(
        kernel,
        out_shape=jax.ShapeDtypeStruct((N, cout, L), jnp.float32),
        grid=(N,),
        in_specs=[
            pl.BlockSpec((pl.Squeezed(), 9 * cin, L), lambda n: (n, 0, 0)),
            pl.BlockSpec((1, L), lambda n: (0, 0)),
            pl.BlockSpec((hid, 9 * cin), lambda n: (0, 0)),
            pl.BlockSpec((hid, 1), lambda n: (0, 0)),
            pl.BlockSpec((hid, 1), lambda n: (0, 0)),
            pl.BlockSpec((hid, 9 * hid), lambda n: (0, 0)),
            pl.BlockSpec((hid, 1), lambda n: (0, 0)),
            pl.BlockSpec((hid, 1), lambda n: (0, 0)),
            pl.BlockSpec((cout, hid), lambda n: (0, 0)),
            pl.BlockSpec((cout, 1), lambda n: (0, 0)),
        ],
        out_specs=pl.BlockSpec((pl.Squeezed(), cout, L), lambda n: (n, 0, 0)),
        compiler_params=pltpu.CompilerParams(
            dimension_semantics=("parallel",)),
    )(patches, mask, w1m, s1, b1f, w2m, s2, b2f, w3m, b3)

    # crop the 1-pixel halo of the extended grid; already NCHW -> no transpose.
    return out_ext.reshape(N, cout, Hp, Wp)[:, :, 1:H + 1, 1:W + 1]


def reference_forward(x_nchw, p, eps=1e-5):
    """Pure-JAX f32 reference (NHWC convs via lax.conv_general_dilated)."""
    x = jnp.transpose(x_nchw, (0, 2, 3, 1)).astype(jnp.float32)

    def conv(x, w, b, pad):
        y = jax.lax.conv_general_dilated(
            x, w, (1, 1), [(pad, pad), (pad, pad)],
            dimension_numbers=("NHWC", "HWIO", "NHWC"))
        return y + b

    def bn(y, g, be, m, v):
        return (y - m) / jnp.sqrt(v + eps) * g + be

    h = jax.nn.relu(bn(conv(x, p["w1"], p["b1"], 1),
                       p["g1"], p["be1"], p["m1"], p["v1"]))
    h = jax.nn.relu(bn(conv(h, p["w2"], p["b2"], 1),
                       p["g2"], p["be2"], p["m2"], p["v2"]))
    logits = conv(h, p["w3"], p["b3"], 0)
    probs = jax.nn.softmax(logits, axis=-1)
    return jnp.transpose(probs, (0, 3, 1, 2))


def init_params(key, in_channels, hidden_lay, out_channels):
    ks = jax.random.split(key, 6)
    f32 = jnp.float32
    p = {
        # conv weights in HWIO layout (kh, kw, cin, cout)
        "w1": 0.1 * jax.random.normal(ks[0], (3, 3, in_channels, hidden_lay), f32),
        "b1": 0.05 * jax.random.normal(ks[1], (hidden_lay,), f32),
        "w2": 0.1 * jax.random.normal(ks[2], (3, 3, hidden_lay, hidden_lay), f32),
        "b2": 0.05 * jax.random.normal(ks[3], (hidden_lay,), f32),
        "w3": 0.1 * jax.random.normal(ks[4], (1, 1, hidden_lay, out_channels), f32),
        "b3": 0.05 * jax.random.normal(ks[5], (out_channels,), f32),
        # fresh-module eval-mode BatchNorm defaults
        "g1": jnp.ones((hidden_lay,), f32), "be1": jnp.zeros((hidden_lay,), f32),
        "m1": jnp.zeros((hidden_lay,), f32), "v1": jnp.ones((hidden_lay,), f32),
        "g2": jnp.ones((hidden_lay,), f32), "be2": jnp.zeros((hidden_lay,), f32),
        "m2": jnp.zeros((hidden_lay,), f32), "v2": jnp.ones((hidden_lay,), f32),
    }
    return p


if __name__ == "__main__":
    N, Cin, H, W = 2, 4, 16, 16
    hidden_lay, out_channels = 32, 3
    # deconv_channels is unused by the PyTorch module's layer list.

    key = jax.random.PRNGKey(0)
    kp, kx = jax.random.split(key)
    params = init_params(kp, Cin, hidden_lay, out_channels)
    x = jax.random.normal(kx, (N, Cin, H, W), jnp.float32)

    out = jax.block_until_ready(last_2d_forward(x, params))
    ref = jax.block_until_ready(reference_forward(x, params))

    assert out.shape == (N, out_channels, H, W)
    # bf16 MXU operands + approx reciprocal -> relaxed tolerance vs f32 ref.
    err = jnp.max(jnp.abs(out - ref))
    assert jnp.allclose(out, ref, atol=3e-2, rtol=3e-2), f"max abs err {err}"
    # softmax sanity: channel probs sum to ~1
    assert jnp.allclose(jnp.sum(out, axis=1), 1.0, atol=1e-2)

    print("KERNEL_OK")
</pallas_src>

<mosaic_0001>
module attributes {stable_mosaic.version = 11 : i64} {
  func.func @_last2d_kernel(%arg0: i32, %arg1: memref<1x36x324xbf16, #tpu.memory_space<vmem>>, %arg2: memref<1x324xf32, #tpu.memory_space<vmem>>, %arg3: memref<32x36xbf16, #tpu.memory_space<vmem>>, %arg4: memref<32x1xf32, #tpu.memory_space<vmem>>, %arg5: memref<32x1xf32, #tpu.memory_space<vmem>>, %arg6: memref<32x288xbf16, #tpu.memory_space<vmem>>, %arg7: memref<32x1xf32, #tpu.memory_space<vmem>>, %arg8: memref<32x1xf32, #tpu.memory_space<vmem>>, %arg9: memref<3x32xbf16, #tpu.memory_space<vmem>>, %arg10: memref<3x1xf32, #tpu.memory_space<vmem>>, %arg11: memref<1x3x324xf32, #tpu.memory_space<vmem>>) attributes {dimension_semantics = [#tpu.dimension_semantics<parallel>], iteration_bounds = array<i64: 2>, scalar_prefetch = 0 : i64, scratch_operands = 0 : i64, tpu.core_type = #tpu.core_type<tc>, window_params = [{transform_indices = @transform_0, window_bounds = array<i64: 1, 36, 324>}, {pipeline_mode = #tpu.pipeline_mode<synchronous>, transform_indices = @transform_1, window_bounds = array<i64: 1, 324>}, {pipeline_mode = #tpu.pipeline_mode<synchronous>, transform_indices = @transform_2, window_bounds = array<i64: 32, 36>}, {pipeline_mode = #tpu.pipeline_mode<synchronous>, transform_indices = @transform_3, window_bounds = array<i64: 32, 1>}, {pipeline_mode = #tpu.pipeline_mode<synchronous>, transform_indices = @transform_4, window_bounds = array<i64: 32, 1>}, {pipeline_mode = #tpu.pipeline_mode<synchronous>, transform_indices = @transform_5, window_bounds = array<i64: 32, 288>}, {pipeline_mode = #tpu.pipeline_mode<synchronous>, transform_indices = @transform_6, window_bounds = array<i64: 32, 1>}, {pipeline_mode = #tpu.pipeline_mode<synchronous>, transform_indices = @transform_7, window_bounds = array<i64: 32, 1>}, {pipeline_mode = #tpu.pipeline_mode<synchronous>, transform_indices = @transform_8, window_bounds = array<i64: 3, 32>}, {pipeline_mode = #tpu.pipeline_mode<synchronous>, transform_indices = @transform_9, window_bounds = array<i64: 3, 1>}, {transform_indices = @transform_10, window_bounds = array<i64: 1, 3, 324>}]} {
    %c0 = arith.constant 0 : index
    %c0_0 = arith.constant 0 : index
    %0 = vector.load %arg3[%c0, %c0_0] : memref<32x36xbf16, #tpu.memory_space<vmem>>, vector<32x36xbf16>
    %c0_1 = arith.constant 0 : index
    %c0_2 = arith.constant 0 : index
    %c0_3 = arith.constant 0 : index
    %1 = vector.load %arg1[%c0_1, %c0_2, %c0_3] : memref<1x36x324xbf16, #tpu.memory_space<vmem>>, vector<1x36x324xbf16>
    %2 = vector.shape_cast %1 : vector<1x36x324xbf16> to vector<36x324xbf16>
    %cst = arith.constant dense<0.000000e+00> : vector<32x324xf32>
    %3 = tpu.matmul %0, %2, %cst {dimension_numbers = #tpu.dot_dimension_numbers<[1], [0], [0], [1], [0, 0, 1, 1], [], []>} : vector<32x36xbf16>, vector<36x324xbf16>, vector<32x324xf32> -> vector<32x324xf32>
    %c0_4 = arith.constant 0 : index
    %c0_5 = arith.constant 0 : index
    %4 = vector.load %arg4[%c0_4, %c0_5] : memref<32x1xf32, #tpu.memory_space<vmem>>, vector<32x1xf32>
    %5 = vector.broadcast %4 : vector<32x1xf32> to vector<32x324xf32>
    %6 = arith.mulf %3, %5 : vector<32x324xf32>
    %c0_6 = arith.constant 0 : index
    %c0_7 = arith.constant 0 : index
    %7 = vector.load %arg5[%c0_6, %c0_7] : memref<32x1xf32, #tpu.memory_space<vmem>>, vector<32x1xf32>
    %8 = vector.broadcast %7 : vector<32x1xf32> to vector<32x324xf32>
    %9 = arith.addf %6, %8 : vector<32x324xf32>
    %cst_8 = arith.constant 0.000000e+00 : f32
    %10 = vector.broadcast %cst_8 : f32 to vector<32x324xf32>
    %11 = arith.maximumf %9, %10 : vector<32x324xf32>
    %c0_9 = arith.constant 0 : index
    %c0_10 = arith.constant 0 : index
    %12 = vector.load %arg2[%c0_9, %c0_10] : memref<1x324xf32, #tpu.memory_space<vmem>>, vector<1x324xf32>
    %13 = vector.broadcast %12 : vector<1x324xf32> to vector<32x324xf32>
    %14 = arith.mulf %11, %13 : vector<32x324xf32>
    %15 = arith.truncf %14 : vector<32x324xf32> to vector<32x324xbf16>
    %cst_11 = arith.constant 0.000000e+00 : bf16
    %16 = vector.broadcast %cst_11 : bf16 to vector<32x19xbf16>
    %17 = tpu.concatenate %16, %15, %16 in 1 : vector<32x19xbf16>, vector<32x324xbf16>, vector<32x19xbf16> -> vector<32x362xbf16>
    %18 = vector.extract_strided_slice %17 {offsets = [0, 0], sizes = [32, 324], strides = [1, 1]} : vector<32x362xbf16> to vector<32x324xbf16>
    %19 = vector.extract_strided_slice %17 {offsets = [0, 1], sizes = [32, 324], strides = [1, 1]} : vector<32x362xbf16> to vector<32x324xbf16>
    %20 = vector.extract_strided_slice %17 {offsets = [0, 2], sizes = [32, 324], strides = [1, 1]} : vector<32x362xbf16> to vector<32x324xbf16>
    %21 = vector.extract_strided_slice %17 {offsets = [0, 18], sizes = [32, 324], strides = [1, 1]} : vector<32x362xbf16> to vector<32x324xbf16>
    %22 = vector.extract_strided_slice %17 {offsets = [0, 19], sizes = [32, 324], strides = [1, 1]} : vector<32x362xbf16> to vector<32x324xbf16>
    %23 = vector.extract_strided_slice %17 {offsets = [0, 20], sizes = [32, 324], strides = [1, 1]} : vector<32x362xbf16> to vector<32x324xbf16>
    %24 = vector.extract_strided_slice %17 {offsets = [0, 36], sizes = [32, 324], strides = [1, 1]} : vector<32x362xbf16> to vector<32x324xbf16>
    %25 = vector.extract_strided_slice %17 {offsets = [0, 37], sizes = [32, 324], strides = [1, 1]} : vector<32x362xbf16> to vector<32x324xbf16>
    %26 = vector.extract_strided_slice %17 {offsets = [0, 38], sizes = [32, 324], strides = [1, 1]} : vector<32x362xbf16> to vector<32x324xbf16>
    %27 = tpu.concatenate %18, %19, %20, %21, %22, %23, %24, %25, %26 in 0 : vector<32x324xbf16>, vector<32x324xbf16>, vector<32x324xbf16>, vector<32x324xbf16>, vector<32x324xbf16>, vector<32x324xbf16>, vector<32x324xbf16>, vector<32x324xbf16>, vector<32x324xbf16> -> vector<288x324xbf16>
    %c0_12 = arith.constant 0 : index
    %c0_13 = arith.constant 0 : index
    %28 = vector.load %arg6[%c0_12, %c0_13] : memref<32x288xbf16, #tpu.memory_space<vmem>>, vector<32x288xbf16>
    %cst_14 = arith.constant dense<0.000000e+00> : vector<32x324xf32>
    %29 = tpu.matmul %28, %27, %cst_14 {dimension_numbers = #tpu.dot_dimension_numbers<[1], [0], [0], [1], [0, 0, 1, 1], [], []>} : vector<32x288xbf16>, vector<288x324xbf16>, vector<32x324xf32> -> vector<32x324xf32>
    %c0_15 = arith.constant 0 : index
    %c0_16 = arith.constant 0 : index
    %30 = vector.load %arg7[%c0_15, %c0_16] : memref<32x1xf32, #tpu.memory_space<vmem>>, vector<32x1xf32>
    %31 = vector.broadcast %30 : vector<32x1xf32> to vector<32x324xf32>
    %32 = arith.mulf %29, %31 : vector<32x324xf32>
    %c0_17 = arith.constant 0 : index
    %c0_18 = arith.constant 0 : index
    %33 = vector.load %arg8[%c0_17, %c0_18] : memref<32x1xf32, #tpu.memory_space<vmem>>, vector<32x1xf32>
    %34 = vector.broadcast %33 : vector<32x1xf32> to vector<32x324xf32>
    %35 = arith.addf %32, %34 : vector<32x324xf32>
    %cst_19 = arith.constant 0.000000e+00 : f32
    %36 = vector.broadcast %cst_19 : f32 to vector<32x324xf32>
    %37 = arith.maximumf %35, %36 : vector<32x324xf32>
    %c0_20 = arith.constant 0 : index
    %c0_21 = arith.constant 0 : index
    %38 = vector.load %arg9[%c0_20, %c0_21] : memref<3x32xbf16, #tpu.memory_space<vmem>>, vector<3x32xbf16>
    %39 = arith.truncf %37 : vector<32x324xf32> to vector<32x324xbf16>
    %cst_22 = arith.constant dense<0.000000e+00> : vector<3x324xf32>
    %40 = tpu.matmul %38, %39, %cst_22 {dimension_numbers = #tpu.dot_dimension_numbers<[1], [0], [0], [1], [0, 0, 1, 1], [], []>} : vector<3x32xbf16>, vector<32x324xbf16>, vector<3x324xf32> -> vector<3x324xf32>
    %c0_23 = arith.constant 0 : index
    %c0_24 = arith.constant 0 : index
    %41 = vector.load %arg10[%c0_23, %c0_24] : memref<3x1xf32, #tpu.memory_space<vmem>>, vector<3x1xf32>
    %42 = vector.broadcast %41 : vector<3x1xf32> to vector<3x324xf32>
    %43 = arith.addf %40, %42 : vector<3x324xf32>
    %44 = vector.extract_strided_slice %43 {offsets = [0, 0], sizes = [1, 324], strides = [1, 1]} : vector<3x324xf32> to vector<1x324xf32>
    %45 = vector.extract_strided_slice %43 {offsets = [1, 0], sizes = [1, 324], strides = [1, 1]} : vector<3x324xf32> to vector<1x324xf32>
    %46 = arith.maximumf %44, %45 : vector<1x324xf32>
    %47 = vector.extract_strided_slice %43 {offsets = [2, 0], sizes = [1, 324], strides = [1, 1]} : vector<3x324xf32> to vector<1x324xf32>
    %48 = arith.maximumf %46, %47 : vector<1x324xf32>
    %49 = vector.broadcast %48 : vector<1x324xf32> to vector<3x324xf32>
    %50 = arith.subf %43, %49 : vector<3x324xf32>
    %51 = math.exp %50 : vector<3x324xf32>
    %52 = vector.extract_strided_slice %51 {offsets = [0, 0], sizes = [1, 324], strides = [1, 1]} : vector<3x324xf32> to vector<1x324xf32>
    %53 = vector.extract_strided_slice %51 {offsets = [1, 0], sizes = [1, 324], strides = [1, 1]} : vector<3x324xf32> to vector<1x324xf32>
    %54 = arith.addf %52, %53 : vector<1x324xf32>
    %55 = vector.extract_strided_slice %51 {offsets = [2, 0], sizes = [1, 324], strides = [1, 1]} : vector<3x324xf32> to vector<1x324xf32>
    %56 = arith.addf %54, %55 : vector<1x324xf32>
    %57 = tpu.reciprocal %56 {approx = true} : vector<1x324xf32> -> vector<1x324xf32>
    %58 = vector.broadcast %57 : vector<1x324xf32> to vector<3x324xf32>
    %59 = arith.mulf %51, %58 : vector<3x324xf32>
    %c0_25 = arith.constant 0 : index
    %c0_26 = arith.constant 0 : index
    %c0_27 = arith.constant 0 : index
    %60 = vector.load %arg11[%c0_25, %c0_26, %c0_27] : memref<1x3x324xf32, #tpu.memory_space<vmem>>, vector<1x3x324xf32>
    %61 = vector.shape_cast %60 : vector<1x3x324xf32> to vector<3x324xf32>
    %62 = vector.shape_cast %59 : vector<3x324xf32> to vector<1x3x324xf32>
    tpu.vector_store %arg11[%c0_25, %c0_26, %c0_27], %62 {strides = array<i32>} : memref<1x3x324xf32, #tpu.memory_space<vmem>>, vector<1x3x324xf32>,
    return
  }
  func.func @transform_0(%arg0: i32) -> (i32, i32, i32) {
    %c0_i32 = arith.constant 0 : i32
    %c0_i32_0 = arith.constant 0 : i32
    %c0_i32_1 = arith.constant 0 : i32
    return %arg0, %c0_i32, %c0_i32_0 : i32, i32, i32
  }
  func.func @transform_1(%arg0: i32) -> (i32, i32) {
    %c0_i32 = arith.constant 0 : i32
    %c0_i32_0 = arith.constant 0 : i32
    %c0_i32_1 = arith.constant 0 : i32
    return %c0_i32, %c0_i32_0 : i32, i32
  }
  func.func @transform_2(%arg0: i32) -> (i32, i32) {
    %c0_i32 = arith.constant 0 : i32
    %c0_i32_0 = arith.constant 0 : i32
    %c0_i32_1 = arith.constant 0 : i32
    return %c0_i32, %c0_i32_0 : i32, i32
  }
  func.func @transform_3(%arg0: i32) -> (i32, i32) {
    %c0_i32 = arith.constant 0 : i32
    %c0_i32_0 = arith.constant 0 : i32
    %c0_i32_1 = arith.constant 0 : i32
    return %c0_i32, %c0_i32_0 : i32, i32
  }
  func.func @transform_4(%arg0: i32) -> (i32, i32) {
    %c0_i32 = arith.constant 0 : i32
    %c0_i32_0 = arith.constant 0 : i32
    %c0_i32_1 = arith.constant 0 : i32
    return %c0_i32, %c0_i32_0 : i32, i32
  }
  func.func @transform_5(%arg0: i32) -> (i32, i32) {
    %c0_i32 = arith.constant 0 : i32
    %c0_i32_0 = arith.constant 0 : i32
    %c0_i32_1 = arith.constant 0 : i32
    return %c0_i32, %c0_i32_0 : i32, i32
  }
  func.func @transform_6(%arg0: i32) -> (i32, i32) {
    %c0_i32 = arith.constant 0 : i32
    %c0_i32_0 = arith.constant 0 : i32
    %c0_i32_1 = arith.constant 0 : i32
    return %c0_i32, %c0_i32_0 : i32, i32
  }
  func.func @transform_7(%arg0: i32) -> (i32, i32) {
    %c0_i32 = arith.constant 0 : i32
    %c0_i32_0 = arith.constant 0 : i32
    %c0_i32_1 = arith.constant 0 : i32
    return %c0_i32, %c0_i32_0 : i32, i32
  }
  func.func @transform_8(%arg0: i32) -> (i32, i32) {
    %c0_i32 = arith.constant 0 : i32
    %c0_i32_0 = arith.constant 0 : i32
    %c0_i32_1 = arith.constant 0 : i32
    return %c0_i32, %c0_i32_0 : i32, i32
  }
  func.func @transform_9(%arg0: i32) -> (i32, i32) {
    %c0_i32 = arith.constant 0 : i32
    %c0_i32_0 = arith.constant 0 : i32
    %c0_i32_1 = arith.constant 0 : i32
    return %c0_i32, %c0_i32_0 : i32, i32
  }
  func.func @transform_10(%arg0: i32) -> (i32, i32, i32) {
    %c0_i32 = arith.constant 0 : i32
    %c0_i32_0 = arith.constant 0 : i32
    %c0_i32_1 = arith.constant 0 : i32
    return %arg0, %c0_i32, %c0_i32_0 : i32, i32, i32
  }
}

</mosaic_0001>

<llo_original>
// kernel: tpu_custom_call.1
$region0: #{tpu_custom_call.1}
  #allocation0 [shape = 'u32[]', space=smem, size = 0x4, offset = 0x4, fixed_abs, tag = 'smem constant byte address 0x4 - core index']
  #allocation1 [shape = 'u32[144,128]{1,0:T(1,128)}', space=vmem, size = 0x12000, scoped, tag = 'internal scratch']
  %s0 = inlined_call_operand.vmem [shape: bf16[2,36,324], index: 0, kind: input, shape index: {}]
  %s1 = inlined_call_operand.vmem [shape: f32[1,324], index: 1, kind: input, shape index: {}]
  %s2 = inlined_call_operand.vmem [shape: bf16[32,36], index: 2, kind: input, shape index: {}]
  %s3 = inlined_call_operand.vmem [shape: f32[32,1], index: 3, kind: input, shape index: {}]
  %s4 = inlined_call_operand.vmem [shape: f32[32,1], index: 4, kind: input, shape index: {}]
  %s5 = inlined_call_operand.vmem [shape: bf16[32,288], index: 5, kind: input, shape index: {}]
  %s6 = inlined_call_operand.vmem [shape: f32[32,1], index: 6, kind: input, shape index: {}]
  %s7 = inlined_call_operand.vmem [shape: f32[32,1], index: 7, kind: input, shape index: {}]
  %s8 = inlined_call_operand.vmem [shape: bf16[3,32], index: 8, kind: input, shape index: {}]
  %s9 = inlined_call_operand.vmem [shape: f32[3,1], index: 9, kind: input, shape index: {}]
  %s10 = inlined_call_operand.vmem [shape: f32[2,3,324], index: 10, kind: output, shape index: {}]
  %s11 = sld [smem:[#allocation0]]
  $region73: #{tpu_custom_call.1} parent=0
    _
  %s13 = ssub.s32 1, %s11
  %s14 = scalar_select 0, %s13, %s11
  loop: start=0, step=1, limit=4
  $region2: #{tpu_custom_call.1} parent=0 // loop_pre_header
    _
  $region3: #{tpu_custom_call.1} parent=0 // loop_header
    %s16 = sphi 0, %s20
    %p17 = scmp.ge.s32.totalorder %s16, 4
    %s26 = sphi 0, %s28
    %s29 = sphi 0, %s26
    %s30 = sphi 0, %s29
    %s46 = sphi 0, %s30
    %s50 = sphi 0, %s50
    %s52 = sphi 0, %s50
    %s53 = sphi 0, %s52
    %s67 = sphi 0, %s53
    %s71 = sphi 0, %s71
    %s73 = sphi 0, %s71
    %s74 = sphi 0, %s73
    %s88 = sphi 0, %s74
    %s92 = sphi 0, %s92
    %s94 = sphi 0, %s92
    %s95 = sphi 0, %s94
    %s109 = sphi 0, %s95
    %s113 = sphi 0, %s113
    %s115 = sphi 0, %s113
    %s116 = sphi 0, %s115
    %s130 = sphi 0, %s116
    %s134 = sphi 0, %s134
    %s136 = sphi 0, %s134
    %s137 = sphi 0, %s136
    %s151 = sphi 0, %s137
    %s155 = sphi 0, %s155
    %s157 = sphi 0, %s155
    %s158 = sphi 0, %s157
    %s172 = sphi 0, %s158
    %s176 = sphi 0, %s176
    %s178 = sphi 0, %s176
    %s179 = sphi 0, %s178
    %s193 = sphi 0, %s179
    %s197 = sphi 0, %s197
    %s199 = sphi 0, %s197
    %s200 = sphi 0, %s199
    %s214 = sphi 0, %s200
    %s218 = sphi 0, %s218
    %s220 = sphi 0, %s218
    %s221 = sphi 0, %s220
    %s235 = sphi 0, %s221
    %s241 = sphi 0, %s243
    %s244 = sphi 0, %s241
    %s245 = sphi 0, %s244
    %s261 = sphi 0, %s245
  $region4: #{tpu_custom_call.1} parent=0 // loop_header_branch
    %19 = sbr.rel (%p17) target = $region8
  $region5: #{tpu_custom_call.1} parent=0 // loop_body
    %s21 = ssub.s32 %s16, 1
    %s22 = ssub.s32 %s16, 2
    %s23 = sadd.s32 %s16, 1
    %s24 = ssub.s32 %s16, %s23
    %p25 = scmp.eq.s32.totalorder %s24, 0
    %s27 = sadd.s32 %s26, 1
    %s28 = scalar_select %p25, %s26, %s27
    %p31 = pneg %p25
    %p32 = scmp.eq.s32.totalorder %s16, 1
    %p33 = por %p31, %p32
    %p34 = scmp.ne.s32.totalorder %s26, %s29
    %p35 = scmp.eq.s32.totalorder %s16, 0
    %p36 = por %p34, %p35
    %p37 = scmp.ne.s32.totalorder %s26, %s29
    %p38 = scmp.eq.s32.totalorder %s21, 1
    %p39 = por %p37, %p38
    %p40 = scmp.ne.s32.totalorder %s29, %s30
    %p41 = scmp.eq.s32.totalorder %s21, 0
    %p42 = por %p40, %p41
    %p43 = scmp.ne.s32.totalorder %s29, %s30
    %p44 = scmp.eq.s32.totalorder %s22, 1
    %p45 = por %p43, %p44
    %p47 = scmp.ne.s32.totalorder %s30, %s46
    %p48 = scmp.eq.s32.totalorder %s22, 0
    %p49 = por %p47, %p48
    %s51 = sadd.s32 %s50, 1
    %p54 = scmp.eq.s32.totalorder %s16, 1
    %p55 = scmp.ne.s32.totalorder %s50, %s52
    %p56 = scmp.eq.s32.totalorder %s16, 0
    %p57 = por %p55, %p56
    %p58 = scmp.ne.s32.totalorder %s50, %s52
    %p59 = scmp.eq.s32.totalorder %s21, 1
    %p60 = por %p58, %p59
    %p61 = scmp.ne.s32.totalorder %s52, %s53
    %p62 = scmp.eq.s32.totalorder %s21, 0
    %p63 = por %p61, %p62
    %p64 = scmp.ne.s32.totalorder %s52, %s53
    %p65 = scmp.eq.s32.totalorder %s22, 1
    %p66 = por %p64, %p65
    %p68 = scmp.ne.s32.totalorder %s53, %s67
    %p69 = scmp.eq.s32.totalorder %s22, 0
    %p70 = por %p68, %p69
    %s72 = sadd.s32 %s71, 1
    %p75 = scmp.eq.s32.totalorder %s16, 1
    %p76 = scmp.ne.s32.totalorder %s71, %s73
    %p77 = scmp.eq.s32.totalorder %s16, 0
    %p78 = por %p76, %p77
    %p79 = scmp.ne.s32.totalorder %s71, %s73
    %p80 = scmp.eq.s32.totalorder %s21, 1
    %p81 = por %p79, %p80
    %p82 = scmp.ne.s32.totalorder %s73, %s74
    %p83 = scmp.eq.s32.totalorder %s21, 0
    %p84 = por %p82, %p83
    %p85 = scmp.ne.s32.totalorder %s73, %s74
    %p86 = scmp.eq.s32.totalorder %s22, 1
    %p87 = por %p85, %p86
    %p89 = scmp.ne.s32.totalorder %s74, %s88
    %p90 = scmp.eq.s32.totalorder %s22, 0
    %p91 = por %p89, %p90
    %s93 = sadd.s32 %s92, 1
    %p96 = scmp.eq.s32.totalorder %s16, 1
    %p97 = scmp.ne.s32.totalorder %s92, %s94
    %p98 = scmp.eq.s32.totalorder %s16, 0
    %p99 = por %p97, %p98
    %p100 = scmp.ne.s32.totalorder %s92, %s94
    %p101 = scmp.eq.s32.totalorder %s21, 1
    %p102 = por %p100, %p101
    %p103 = scmp.ne.s32.totalorder %s94, %s95
    %p104 = scmp.eq.s32.totalorder %s21, 0
    %p105 = por %p103, %p104
    %p106 = scmp.ne.s32.totalorder %s94, %s95
    %p107 = scmp.eq.s32.totalorder %s22, 1
    %p108 = por %p106, %p107
    %p110 = scmp.ne.s32.totalorder %s95, %s109
    %p111 = scmp.eq.s32.totalorder %s22, 0
    %p112 = por %p110, %p111
    %s114 = sadd.s32 %s113, 1
    %p117 = scmp.eq.s32.totalorder %s16, 1
    %p118 = scmp.ne.s32.totalorder %s113, %s115
    %p119 = scmp.eq.s32.totalorder %s16, 0
    %p120 = por %p118, %p119
    %p121 = scmp.ne.s32.totalorder %s113, %s115
    %p122 = scmp.eq.s32.totalorder %s21, 1
    %p123 = por %p121, %p122
    %p124 = scmp.ne.s32.totalorder %s115, %s116
    %p125 = scmp.eq.s32.totalorder %s21, 0
    %p126 = por %p124, %p125
    %p127 = scmp.ne.s32.totalorder %s115, %s116
    %p128 = scmp.eq.s32.totalorder %s22, 1
    %p129 = por %p127, %p128
    %p131 = scmp.ne.s32.totalorder %s116, %s130
    %p132 = scmp.eq.s32.totalorder %s22, 0
    %p133 = por %p131, %p132
    %s135 = sadd.s32 %s134, 1
    %p138 = scmp.eq.s32.totalorder %s16, 1
    %p139 = scmp.ne.s32.totalorder %s134, %s136
    %p140 = scmp.eq.s32.totalorder %s16, 0
    %p141 = por %p139, %p140
    %p142 = scmp.ne.s32.totalorder %s134, %s136
    %p143 = scmp.eq.s32.totalorder %s21, 1
    %p144 = por %p142, %p143
    %p145 = scmp.ne.s32.totalorder %s136, %s137
    %p146 = scmp.eq.s32.totalorder %s21, 0
    %p147 = por %p145, %p146
    %p148 = scmp.ne.s32.totalorder %s136, %s137
    %p149 = scmp.eq.s32.totalorder %s22, 1
    %p150 = por %p148, %p149
    %p152 = scmp.ne.s32.totalorder %s137, %s151
    %p153 = scmp.eq.s32.totalorder %s22, 0
    %p154 = por %p152, %p153
    %s156 = sadd.s32 %s155, 1
    %p159 = scmp.eq.s32.totalorder %s16, 1
    %p160 = scmp.ne.s32.totalorder %s155, %s157
    %p161 = scmp.eq.s32.totalorder %s16, 0
    %p162 = por %p160, %p161
    %p163 = scmp.ne.s32.totalorder %s155, %s157
    %p164 = scmp.eq.s32.totalorder %s21, 1
    %p165 = por %p163, %p164
    %p166 = scmp.ne.s32.totalorder %s157, %s158
    %p167 = scmp.eq.s32.totalorder %s21, 0
    %p168 = por %p166, %p167
    %p169 = scmp.ne.s32.totalorder %s157, %s158
    %p170 = scmp.eq.s32.totalorder %s22, 1
    %p171 = por %p169, %p170
    %p173 = scmp.ne.s32.totalorder %s158, %s172
    %p174 = scmp.eq.s32.totalorder %s22, 0
    %p175 = por %p173, %p174
    %s177 = sadd.s32 %s176, 1
    %p180 = scmp.eq.s32.totalorder %s16, 1
    %p181 = scmp.ne.s32.totalorder %s176, %s178
    %p182 = scmp.eq.s32.totalorder %s16, 0
    %p183 = por %p181, %p182
    %p184 = scmp.ne.s32.totalorder %s176, %s178
    %p185 = scmp.eq.s32.totalorder %s21, 1
    %p186 = por %p184, %p185
    %p187 = scmp.ne.s32.totalorder %s178, %s179
    %p188 = scmp.eq.s32.totalorder %s21, 0
    %p189 = por %p187, %p188
    %p190 = scmp.ne.s32.totalorder %s178, %s179
    %p191 = scmp.eq.s32.totalorder %s22, 1
    %p192 = por %p190, %p191
    %p194 = scmp.ne.s32.totalorder %s179, %s193
    %p195 = scmp.eq.s32.totalorder %s22, 0
    %p196 = por %p194, %p195
    %s198 = sadd.s32 %s197, 1
    %p201 = scmp.eq.s32.totalorder %s16, 1
    %p202 = scmp.ne.s32.totalorder %s197, %s199
    %p203 = scmp.eq.s32.totalorder %s16, 0
    %p204 = por %p202, %p203
    %p205 = scmp.ne.s32.totalorder %s197, %s199
    %p206 = scmp.eq.s32.totalorder %s21, 1
    %p207 = por %p205, %p206
    %p208 = scmp.ne.s32.totalorder %s199, %s200
    %p209 = scmp.eq.s32.totalorder %s21, 0
    %p210 = por %p208, %p209
    %p211 = scmp.ne.s32.totalorder %s199, %s200
    %p212 = scmp.eq.s32.totalorder %s22, 1
    %p213 = por %p211, %p212
    %p215 = scmp.ne.s32.totalorder %s200, %s214
    %p216 = scmp.eq.s32.totalorder %s22, 0
    %p217 = por %p215, %p216
    %s219 = sadd.s32 %s218, 1
    %p222 = scmp.eq.s32.totalorder %s16, 1
    %p223 = scmp.ne.s32.totalorder %s218, %s220
    %p224 = scmp.eq.s32.totalorder %s16, 0
    %p225 = por %p223, %p224
    %p226 = scmp.ne.s32.totalorder %s218, %s220
    %p227 = scmp.eq.s32.totalorder %s21, 1
    %p228 = por %p226, %p227
    %p229 = scmp.ne.s32.totalorder %s220, %s221
    %p230 = scmp.eq.s32.totalorder %s21, 0
    %p231 = por %p229, %p230
    %p232 = scmp.ne.s32.totalorder %s220, %s221
    %p233 = scmp.eq.s32.totalorder %s22, 1
    %p234 = por %p232, %p233
    %p236 = scmp.ne.s32.totalorder %s221, %s235
    %p237 = scmp.eq.s32.totalorder %s22, 0
    %p238 = por %p236, %p237
    %s239 = ssub.s32 %s16, %s23
    %p240 = scmp.eq.s32.totalorder %s239, 0
    %s242 = sadd.s32 %s241, 1
    %s243 = scalar_select %p240, %s241, %s242
    %p246 = pneg %p240
    %p247 = scmp.eq.s32.totalorder %s16, 1
    %p248 = por %p246, %p247
    %p249 = scmp.ne.s32.totalorder %s241, %s244
    %p250 = scmp.eq.s32.totalorder %s16, 0
    %p251 = por %p249, %p250
    %p252 = scmp.ne.s32.totalorder %s241, %s244
    %p253 = scmp.eq.s32.totalorder %s21, 1
    %p254 = por %p252, %p253
    %p255 = scmp.ne.s32.totalorder %s244, %s245
    %p256 = scmp.eq.s32.totalorder %s21, 0
    %p257 = por %p255, %p256
    %p258 = scmp.ne.s32.totalorder %s244, %s245
    %p259 = scmp.eq.s32.totalorder %s22, 1
    %p260 = por %p258, %p259
    %p262 = scmp.ne.s32.totalorder %s245, %s261
    %p263 = scmp.eq.s32.totalorder %s22, 0
    %p264 = por %p262, %p263
    %p265 = scmp.le.s32.totalorder 1, %s16
    %p266 = scmp.lt.s32.totalorder %s16, 3
    %p267 = pnand %p265, %p266
    %p268 = pneg %p267
    // Predicated region
    $region9: #{tpu_custom_call.1} parent=5 // pred_check
      _
    $region10: #{tpu_custom_call.1} parent=5 // pred_check_branch
      %270 = sbr.rel (%p267) target = $region12
    $region11: #{tpu_custom_call.1} parent=5 // pred_region
      %s271 = ssub.s32 %s16, 1
      // Predicated region
      $region13: #{tpu_custom_call.1} parent=11 // pred_check
        %p272 = pneg %p63
      $region14: #{tpu_custom_call.1} parent=11 // pred_check_branch
        %274 = sbr.rel (%p272) target = $region16
      $region15: #{tpu_custom_call.1} parent=11 // pred_region
        _
      $region16: #{tpu_custom_call.1} parent=11 // pred_fallthru
        _
      // Predicated region
      $region17: #{tpu_custom_call.1} parent=11 // pred_check
        %p275 = pneg %p84
      $region18: #{tpu_custom_call.1} parent=11 // pred_check_branch
        %277 = sbr.rel (%p275) target = $region20
      $region19: #{tpu_custom_call.1} parent=11 // pred_region
        _
      $region20: #{tpu_custom_call.1} parent=11 // pred_fallthru
        _
      // Predicated region
      $region21: #{tpu_custom_call.1} parent=11 // pred_check
        %p278 = pneg %p105
      $region22: #{tpu_custom_call.1} parent=11 // pred_check_branch
        %280 = sbr.rel (%p278) target = $region24
      $region23: #{tpu_custom_call.1} parent=11 // pred_region
        _
      $region24: #{tpu_custom_call.1} parent=11 // pred_fallthru
        _
      // Predicated region
      $region25: #{tpu_custom_call.1} parent=11 // pred_check
        %p281 = pneg %p126
      $region26: #{tpu_custom_call.1} parent=11 // pred_check_branch
        %283 = sbr.rel (%p281) target = $region28
      $region27: #{tpu_custom_call.1} parent=11 // pred_region
        _
      $region28: #{tpu_custom_call.1} parent=11 // pred_fallthru
        _
      // Predicated region
      $region29: #{tpu_custom_call.1} parent=11 // pred_check
        %p284 = pneg %p147
      $region30: #{tpu_custom_call.1} parent=11 // pred_check_branch
        %286 = sbr.rel (%p284) target = $region32
      $region31: #{tpu_custom_call.1} parent=11 // pred_region
        _
      $region32: #{tpu_custom_call.1} parent=11 // pred_fallthru
        _
      // Predicated region
      $region33: #{tpu_custom_call.1} parent=11 // pred_check
        %p287 = pneg %p168
      $region34: #{tpu_custom_call.1} parent=11 // pred_check_branch
        %289 = sbr.rel (%p287) target = $region36
      $region35: #{tpu_custom_call.1} parent=11 // pred_region
        _
      $region36: #{tpu_custom_call.1} parent=11 // pred_fallthru
        _
      // Predicated region
      $region37: #{tpu_custom_call.1} parent=11 // pred_check
        %p290 = pneg %p189
      $region38: #{tpu_custom_call.1} parent=11 // pred_check_branch
        %292 = sbr.rel (%p290) target = $region40
      $region39: #{tpu_custom_call.1} parent=11 // pred_region
        _
      $region40: #{tpu_custom_call.1} parent=11 // pred_fallthru
        _
      // Predicated region
      $region41: #{tpu_custom_call.1} parent=11 // pred_check
        %p293 = pneg %p210
      $region42: #{tpu_custom_call.1} parent=11 // pred_check_branch
        %295 = sbr.rel (%p293) target = $region44
      $region43: #{tpu_custom_call.1} parent=11 // pred_region
        _
      $region44: #{tpu_custom_call.1} parent=11 // pred_fallthru
        _
      // Predicated region
      $region45: #{tpu_custom_call.1} parent=11 // pred_check
        %p296 = pneg %p231
      $region46: #{tpu_custom_call.1} parent=11 // pred_check_branch
        %298 = sbr.rel (%p296) target = $region48
      $region47: #{tpu_custom_call.1} parent=11 // pred_region
        _
      $region48: #{tpu_custom_call.1} parent=11 // pred_fallthru
        _
    $region12: #{tpu_custom_call.1} parent=5 // pred_fallthru
      _
    %p299 = scmp.lt.s32.totalorder %s16, 2
    // Predicated region
    $region49: #{tpu_custom_call.1} parent=5 // pred_check
      %p300 = pneg %p299
    $region50: #{tpu_custom_call.1} parent=5 // pred_check_branch
      %302 = sbr.rel (%p300) target = $region52
    $region51: #{tpu_custom_call.1} parent=5 // pred_region
      // Predicated region
      $region53: #{tpu_custom_call.1} parent=51 // pred_check
        %p303 = pneg %p36
      $region54: #{tpu_custom_call.1} parent=51 // pred_check_branch
        %305 = sbr.rel (%p303) target = $region56
      $region55: #{tpu_custom_call.1} parent=51 // pred_region
        %p306 = scmp.lt.s32.totalorder %s16, 1
        %s307 = scalar_select %p306, %s16, 1
        %s308 = smul.addr %s307, 15
        %s309 = smul.addr %s308, 4
        %s310 = scalar_lea.vmem %s0, %s309
      $region56: #{tpu_custom_call.1} parent=51 // pred_fallthru
        _
    $region52: #{tpu_custom_call.1} parent=5 // pred_fallthru
      _
    %p311 = scmp.le.s32.totalorder 1, %s16
    %p312 = scmp.lt.s32.totalorder %s16, 3
    %p313 = pnand %p311, %p312
    %p314 = pneg %p313
    // Predicated region
    $region57: #{tpu_custom_call.1} parent=5 // pred_check
      _
    $region58: #{tpu_custom_call.1} parent=5 // pred_check_branch
      %316 = sbr.rel (%p313) target = $region60
    $region59: #{tpu_custom_call.1} parent=5 // pred_region
      %s317 = ssub.s32 %s16, 1
      %p318 = scmp.lt.s32.totalorder %s21, 1
      %s319 = scalar_select %p318, %s21, 1
      %s320 = smul.addr %s319, 15
      %s321 = smul.addr %s320, 4
      %s322 = scalar_lea.vmem %s0, %s321
      %p323 = pneg %p42
      %p324 = pneg %p39
      %p325 = pneg %p63
      %p326 = pneg %p60
      %p327 = pneg %p84
      %p328 = pneg %p81
      %p329 = pneg %p105
      %p330 = pneg %p102
      %p331 = pneg %p126
      %p332 = pneg %p123
      %p333 = pneg %p147
      %p334 = pneg %p144
      %p335 = pneg %p168
      %p336 = pneg %p165
      %p337 = pneg %p189
      %p338 = pneg %p186
      %p339 = pneg %p210
      %p340 = pneg %p207
      %p341 = pneg %p231
      %p342 = pneg %p228
      %p343 = pneg %p257
      %p344 = pneg %p254
      %p345 = scmp.lt.s32.totalorder %s21, 1
      %s346 = scalar_select %p345, %s21, 1
      %s347 = smul.addr %s346, 3
      %s348 = smul.addr %s347, 4
      %s349 = scalar_lea.vmem %s10, %s348
      %p350 = scmp.lt.s32.totalorder %s21, 1
      %s351 = scalar_select %p350, %s21, 1
      %s352 = smul.addr %s351, 15
      %s353 = smul.addr %s352, 4
      %s354 = scalar_lea.vmem %s0, %s353
      %p355 = scmp.lt.s32.totalorder %s21, 1
      %s356 = scalar_select %p355, %s21, 1
      %s357 = smul.addr %s356, 3
      %s358 = smul.addr %s357, 4
      %s359 = scalar_lea.vmem %s10, %s358
      %v361 = vld [vmem:[%s2] sm:$0xf]
      %v362 = vld [vmem:[%s2 + $0x4] sm:$0xf]
      %v363 = vld [vmem:[%s2 + $0x8] sm:$0xf]
      %v364 = vld [vmem:[%s2 + $0xc] sm:$0xf]
      %v365 = vld [vmem:[%s354] sm:$0xff]
      %v366 = vld [vmem:[%s354 + $0x8] sm:$0xf]
      %v367 = vld [vmem:[%s354 + $0xc] sm:$0xff]
      %v368 = vld [vmem:[%s354 + $0x14] sm:$0xf]
      %v369 = vld [vmem:[%s354 + $0x18] sm:$0xff]
      %v370 = vld [vmem:[%s354 + $0x20] sm:$0xf]
      %v371 = vld [vmem:[%s354 + $0x24] sm:$0xff]
      %v372 = vld [vmem:[%s354 + $0x2c] sm:$0xf]
      %v373 = vld [vmem:[%s354 + $0x30] sm:$0x33]
      %v374 = vld [vmem:[%s354 + $0x38] sm:$0x3]
      %v379 = vunpack.c.l.b16 %v361
      %v380 = vunpack.c.l.b16 %v362
      %v381 = vunpack.c.l.b16 %v363
      %v382 = vunpack.c.l.b16 %v364
      %v383 = vpack.c.b16 %v380, %v379
      %v384 = vpack.c.b16 %v382, %v381
      %v395 = vunpack.c.l.b16 %v365
      %v396 = vunpack.c.h.b16 %v365
      %v397 = vunpack.c.l.b16 %v366
      %v398 = vunpack.c.l.b16 %v367
      %v399 = vunpack.c.h.b16 %v367
      %v400 = vunpack.c.l.b16 %v368
      %v401 = vunpack.c.l.b16 %v369
      %v402 = vunpack.c.h.b16 %v369
      %v403 = vunpack.c.l.b16 %v370
      %v404 = vunpack.c.l.b16 %v371
      %v405 = vunpack.c.h.b16 %v371
      %v406 = vunpack.c.l.b16 %v372
      %v407 = vunpack.c.l.b16 %v373
      %v408 = vunpack.c.h.b16 %v373
      %v409 = vunpack.c.l.b16 %v374
      %v410 = vpack.c.b16 %v398, %v395
      %v411 = vpack.c.b16 %v399, %v396
      %v412 = vpack.c.b16 %v400, %v397
      %v413 = vpack.c.b16 %v404, %v401
      %v414 = vpack.c.b16 %v405, %v402
      %v415 = vpack.c.b16 %v406, %v403
      %v416 = vpack.c.b16 %v407, %v407
      %v417 = vpack.c.b16 %v408, %v408
      %v418 = vpack.c.b16 %v409, %v409
      %vm425 = vcmask 293888
      %v427 = vsel %vm425, %v383, 0
      %v430 = vsel %vm425, %v384, 0
      %vm432 = vcmask 1041408
      %v434 = vsel %vm432, %v416, 0
      %v437 = vsel %vm432, %v417, 0
      %v440 = vsel %vm432, %v418, 0
      %442 = vmatprep.subr.bf16.mxu0 0
      %443 = vmatpush1.bf16.msra.mxu0 0
      %444 = vmatprep.subr.bf16.mxu0 0
      %445 = vmatpush1.bf16.msra.mxu0 0
      %446 = vmatprep.subr.bf16.mxu0 0
      %447 = vmatpush1.bf16.msra.mxu0 0
      %448 = vmatprep.subr.bf16.mxu0 0
      %449 = vmatpush1.bf16.msra.mxu0 0
      %450 = vmatprep.subr.bf16.mxu0 0
      %451 = vmatpush1.bf16.msra.mxu0 0
      %452 = vmatprep.subr.bf16.mxu0 %v437
      %453 = vmatpush1.bf16.msra.mxu0 %v434
      %454 = vmatprep.subr.bf16.mxu0 %v414
      %455 = vmatpush1.bf16.msra.mxu0 %v413
      %456 = vmatprep.subr.bf16.mxu0 %v411
      %457 = vmatpush1.bf16.msra.mxu0 %v410
      %458 = vmatprep.subr.bf16.mxu0 0
      %459 = vmatpush2.bf16.msra.mxu0 0
      %460 = vmatprep.subr.bf16.mxu0 0
      %461 = vmatpush2.bf16.msra.mxu0 0
      %462 = vmatprep.subr.bf16.mxu0 0
      %463 = vmatpush2.bf16.msra.mxu0 0
      %464 = vmatprep.subr.bf16.mxu0 0
      %465 = vmatpush2.bf16.msra.mxu0 0
      %466 = vmatprep.subr.bf16.mxu0 0
      %467 = vmatpush2.bf16.msra.mxu0 0
      %468 = vmatprep.subr.bf16.mxu0 0
      %469 = vmatpush2.bf16.msra.mxu0 0
      %470 = vmatprep.subr.bf16.mxu0 0
      %471 = vmatpush2.bf16.msra.mxu0 0
      %472 = vmatprep.subr.bf16.mxu0 0
      %473 = vmatpush2.bf16.msra.mxu0 0
      %474 = vmatprep.mubr.bf16.mxu0 0
      %475 = vmatmul.mubr.bf16.gmra.mxu0 %v427
      %v476 = vpop.f32.mrf.mxu0
      %v477 = vadd.f32 0.0, %v476
      %v478 = vpop.f32.mrf.mxu0
      %v479 = vadd.f32 0.0, %v478
      %v480 = vpop.f32.mrf.mxu0
      %v481 = vadd.f32 0.0, %v480
      %v482 = vpop.f32.mrf.mxu0
      %v483 = vadd.f32 0.0, %v482
      %484 = vmatprep.mubr.bf16.mxu0 0
      %485 = vmatmul.mubr.bf16.gmra.mxu0 %v430
      %v486 = vpop.f32.mrf.mxu0
      %v487 = vadd.f32 0.0, %v486
      %v488 = vpop.f32.mrf.mxu0
      %v489 = vadd.f32 0.0, %v488
      %v490 = vpop.f32.mrf.mxu0
      %v491 = vadd.f32 0.0, %v490
      %v492 = vpop.f32.mrf.mxu0
      %v493 = vadd.f32 0.0, %v492
      %494 = vdwg.mxu0
      %495 = vmatprep.subr.bf16.mxu0 0
      %496 = vmatpush1.bf16.msra.mxu0 0
      %497 = vmatprep.subr.bf16.mxu0 0
      %498 = vmatpush1.bf16.msra.mxu0 0
      %499 = vmatprep.subr.bf16.mxu0 0
      %500 = vmatpush1.bf16.msra.mxu0 0
      %501 = vmatprep.subr.bf16.mxu0 0
      %502 = vmatpush1.bf16.msra.mxu0 0
      %503 = vmatprep.subr.bf16.mxu0 0
      %504 = vmatpush1.bf16.msra.mxu0 0
      %505 = vmatprep.subr.bf16.mxu0 0
      %506 = vmatpush1.bf16.msra.mxu0 %v440
      %507 = vmatprep.subr.bf16.mxu0 0
      %508 = vmatpush1.bf16.msra.mxu0 %v415
      %509 = vmatprep.subr.bf16.mxu0 0
      %510 = vmatpush1.bf16.msra.mxu0 %v412
      %511 = vmatprep.subr.bf16.mxu0 0
      %512 = vmatpush2.bf16.msra.mxu0 0
      %513 = vmatprep.subr.bf16.mxu0 0
      %514 = vmatpush2.bf16.msra.mxu0 0
      %515 = vmatprep.subr.bf16.mxu0 0
      %516 = vmatpush2.bf16.msra.mxu0 0
      %517 = vmatprep.subr.bf16.mxu0 0
      %518 = vmatpush2.bf16.msra.mxu0 0
      %519 = vmatprep.subr.bf16.mxu0 0
      %520 = vmatpush2.bf16.msra.mxu0 0
      %521 = vmatprep.subr.bf16.mxu0 0
      %522 = vmatpush2.bf16.msra.mxu0 0
      %523 = vmatprep.subr.bf16.mxu0 0
      %524 = vmatpush2.bf16.msra.mxu0 0
      %525 = vmatprep.subr.bf16.mxu0 0
      %526 = vmatpush2.bf16.msra.mxu0 0
      %527 = vmatprep.mubr.bf16.mxu0 0
      %528 = vmatmul.mubr.bf16.gmra.mxu0 %v427
      %v529 = vpop.f32.mrf.mxu0
      %v530 = vadd.f32 0.0, %v529
      %v531 = vpop.f32.mrf.mxu0
      %v532 = vpop.f32.mrf.mxu0
      %v533 = vadd.f32 0.0, %v532
      %v534 = vpop.f32.mrf.mxu0
      %535 = vmatprep.mubr.bf16.mxu0 0
      %536 = vmatmul.mubr.bf16.gmra.mxu0 %v430
      %v537 = vpop.f32.mrf.mxu0
      %v538 = vadd.f32 0.0, %v537
      %v539 = vpop.f32.mrf.mxu0
      %v540 = vpop.f32.mrf.mxu0
      %v541 = vadd.f32 0.0, %v540
      %v542 = vpop.f32.mrf.mxu0
      %543 = vdwg.mxu0
      %v544 = vld [vmem:[%s3] sm:$0xff]
      %v545 = vld [vmem:[%s3 + $0x8] sm:$0xff]
      %v546 = vld [vmem:[%s3 + $0x10] sm:$0xff]
      %v547 = vld [vmem:[%s3 + $0x18] sm:$0xff]
      %549 = vset.pattern.permute.xlu0 0
      %550 = vperm.xlu0 %549, %v544
      %v551 = vpop.permute.xlu0 %550
      %554 = vset.pattern.permute.xlu0 0
      %555 = vperm.xlu0 %554, %v545
      %v556 = vpop.permute.xlu0 %555
      %559 = vset.pattern.permute.xlu0 0
      %560 = vperm.xlu0 %559, %v546
      %v561 = vpop.permute.xlu0 %560
      %564 = vset.pattern.permute.xlu0 0
      %565 = vperm.xlu0 %564, %v547
      %v566 = vpop.permute.xlu0 %565
      %v568 = vmul.f32 %v477, %v551
      %v569 = vmul.f32 %v479, %v551
      %v570 = vmul.f32 %v530, %v551
      %v571 = vmul.f32 %v481, %v556
      %v572 = vmul.f32 %v483, %v556
      %v573 = vmul.f32 %v533, %v556
      %v574 = vmul.f32 %v487, %v561
      %v575 = vmul.f32 %v489, %v561
      %v576 = vmul.f32 %v538, %v561
      %v577 = vmul.f32 %v491, %v566
      %v578 = vmul.f32 %v493, %v566
      %v579 = vmul.f32 %v541, %v566
      %v580 = vld [vmem:[%s4] sm:$0xff]
      %v581 = vld [vmem:[%s4 + $0x8] sm:$0xff]
      %v582 = vld [vmem:[%s4 + $0x10] sm:$0xff]
      %v583 = vld [vmem:[%s4 + $0x18] sm:$0xff]
      %585 = vset.pattern.permute.xlu0 0
      %586 = vperm.xlu0 %585, %v580
      %v587 = vpop.permute.xlu0 %586
      %590 = vset.pattern.permute.xlu0 0
      %591 = vperm.xlu0 %590, %v581
      %v592 = vpop.permute.xlu0 %591
      %595 = vset.pattern.permute.xlu0 0
      %596 = vperm.xlu0 %595, %v582
      %v597 = vpop.permute.xlu0 %596
      %600 = vset.pattern.permute.xlu0 0
      %601 = vperm.xlu0 %600, %v583
      %v602 = vpop.permute.xlu0 %601
      %v604 = vadd.f32 %v568, %v587
      %v605 = vadd.f32 %v569, %v587
      %v606 = vadd.f32 %v570, %v587
      %v607 = vadd.f32 %v571, %v592
      %v608 = vadd.f32 %v572, %v592
      %v609 = vadd.f32 %v573, %v592
      %v610 = vadd.f32 %v574, %v597
      %v611 = vadd.f32 %v575, %v597
      %v612 = vadd.f32 %v576, %v597
      %v613 = vadd.f32 %v577, %v602
      %v614 = vadd.f32 %v578, %v602
      %v615 = vadd.f32 %v579, %v602
      %v616 = vmax.f32 %v604, 0.0
      %v617 = vmax.f32 %v605, 0.0
      %v618 = vmax.f32 %v606, 0.0
      %v619 = vmax.f32 %v607, 0.0
      %v620 = vmax.f32 %v608, 0.0
      %v621 = vmax.f32 %v609, 0.0
      %v622 = vmax.f32 %v610, 0.0
      %v623 = vmax.f32 %v611, 0.0
      %v624 = vmax.f32 %v612, 0.0
      %v625 = vmax.f32 %v613, 0.0
      %v626 = vmax.f32 %v614, 0.0
      %v627 = vmax.f32 %v615, 0.0
      %v628 = vld [vmem:[%s1] sm:$0x7]
      %v630 = vlaneseq
      %v631 = vshrl.u32 %v630, 7
      %v632 = vsub.s32 0, %v631
      %v633 = vrot.slane %v628, %v632
      %v634 = vlaneseq
      %v635 = vshrl.u32 %v634, 7
      %v636 = vsub.s32 1, %v635
      %v637 = vrot.slane %v628, %v636
      %v638 = vlaneseq
      %v639 = vshrl.u32 %v638, 7
      %v640 = vsub.s32 2, %v639
      %v641 = vrot.slane %v628, %v640
      %v645 = vmul.f32 %v616, %v633
      %v646 = vmul.f32 %v617, %v637
      %v647 = vmul.f32 %v618, %v641
      %v648 = vmul.f32 %v619, %v633
      %v649 = vmul.f32 %v620, %v637
      %v650 = vmul.f32 %v621, %v641
      %v651 = vmul.f32 %v622, %v633
      %v652 = vmul.f32 %v623, %v637
      %v653 = vmul.f32 %v624, %v641
      %v654 = vmul.f32 %v625, %v633
      %v655 = vmul.f32 %v626, %v637
      %v656 = vmul.f32 %v627, %v641
      %v657 = vpack.c.bf16 %v648, %v645
      %v658 = vpack.c.bf16 %v649, %v646
      %v659 = vpack.c.bf16 %v650, %v647
      %v660 = vpack.c.bf16 %v654, %v651
      %v661 = vpack.c.bf16 %v655, %v652
      %v662 = vpack.c.bf16 %v656, %v653
      %669 = vrot.lane.b32.xlu0 %v657, 19
      %v670 = vpop.permute.xlu0 %669
      %671 = vrot.lane.b32.xlu0 %v658, 19
      %v672 = vpop.permute.xlu0 %671
      %673 = vrot.lane.b32.xlu0 %v659, 19
      %v674 = vpop.permute.xlu0 %673
      %675 = vrot.lane.b32.xlu0 %v660, 19
      %v676 = vpop.permute.xlu0 %675
      %677 = vrot.lane.b32.xlu0 %v661, 19
      %v678 = vpop.permute.xlu0 %677
      %679 = vrot.lane.b32.xlu0 %v662, 19
      %v680 = vpop.permute.xlu0 %679
      %vm681 = vcmask 154624
      %v682 = vsel %vm681, %v670, %v672
      %v683 = vsel %vm681, %v672, %v674
      %v684 = vsel %vm681, %v676, %v678
      %v685 = vsel %vm681, %v678, %v680
      %vm688 = vcmask 154624
      %v691 = vsel %vm688, 0, %v670
      %v694 = vsel %vm688, 0, %v676
      %vm696 = vcmask 711680
      %v698 = vsel %vm696, %v683, 0
      %v701 = vsel %vm696, %v685, 0
      %707 = vrot.lane.b32.xlu0 %v691, 127
      %v708 = vpop.permute.xlu0 %707
      %709 = vrot.lane.b32.xlu0 %v682, 127
      %v710 = vpop.permute.xlu0 %709
      %711 = vrot.lane.b32.xlu0 %v698, 127
      %v712 = vpop.permute.xlu0 %711
      %713 = vrot.lane.b32.xlu0 %v694, 127
      %v714 = vpop.permute.xlu0 %713
      %715 = vrot.lane.b32.xlu0 %v684, 127
      %v716 = vpop.permute.xlu0 %715
      %717 = vrot.lane.b32.xlu0 %v701, 127
      %v718 = vpop.permute.xlu0 %717
      %vm719 = vcmask 1039360
      %v720 = vsel %vm719, %v708, %v710
      %v721 = vsel %vm719, %v710, %v712
      %v722 = vsel %vm719, %v714, %v716
      %v723 = vsel %vm719, %v716, %v718
      %730 = vrot.lane.b32.xlu0 %v691, 126
      %v731 = vpop.permute.xlu0 %730
      %732 = vrot.lane.b32.xlu0 %v682, 126
      %v733 = vpop.permute.xlu0 %732
      %734 = vrot.lane.b32.xlu0 %v698, 126
      %v735 = vpop.permute.xlu0 %734
      %736 = vrot.lane.b32.xlu0 %v694, 126
      %v737 = vpop.permute.xlu0 %736
      %738 = vrot.lane.b32.xlu0 %v684, 126
      %v739 = vpop.permute.xlu0 %738
      %740 = vrot.lane.b32.xlu0 %v701, 126
      %v741 = vpop.permute.xlu0 %740
      %vm742 = vcmask 1031168
      %v743 = vsel %vm742, %v731, %v733
      %v744 = vsel %vm742, %v733, %v735
      %v745 = vsel %vm742, %v737, %v739
      %v746 = vsel %vm742, %v739, %v741
      %753 = vrot.lane.b32.xlu0 %v691, 110
      %v754 = vpop.permute.xlu0 %753
      %755 = vrot.lane.b32.xlu0 %v682, 110
      %v756 = vpop.permute.xlu0 %755
      %757 = vrot.lane.b32.xlu0 %v698, 110
      %v758 = vpop.permute.xlu0 %757
      %759 = vrot.lane.b32.xlu0 %v694, 110
      %v760 = vpop.permute.xlu0 %759
      %761 = vrot.lane.b32.xlu0 %v684, 110
      %v762 = vpop.permute.xlu0 %761
      %763 = vrot.lane.b32.xlu0 %v701, 110
      %v764 = vpop.permute.xlu0 %763
      %vm765 = vcmask 900096
      %v766 = vsel %vm765, %v754, %v756
      %v767 = vsel %vm765, %v756, %v758
      %v768 = vsel %vm765, %v760, %v762
      %v769 = vsel %vm765, %v762, %v764
      %776 = vrot.lane.b32.xlu0 %v691, 109
      %v777 = vpop.permute.xlu0 %776
      %778 = vrot.lane.b32.xlu0 %v682, 109
      %v779 = vpop.permute.xlu0 %778
      %780 = vrot.lane.b32.xlu0 %v698, 109
      %v781 = vpop.permute.xlu0 %780
      %782 = vrot.lane.b32.xlu0 %v694, 109
      %v783 = vpop.permute.xlu0 %782
      %784 = vrot.lane.b32.xlu0 %v684, 109
      %v785 = vpop.permute.xlu0 %784
      %786 = vrot.lane.b32.xlu0 %v701, 109
      %v787 = vpop.permute.xlu0 %786
      %vm788 = vcmask 891904
      %v789 = vsel %vm788, %v777, %v779
      %v790 = vsel %vm788, %v779, %v781
      %v791 = vsel %vm788, %v783, %v785
      %v792 = vsel %vm788, %v785, %v787
      %799 = vrot.lane.b32.xlu0 %v691, 108
      %v800 = vpop.permute.xlu0 %799
      %801 = vrot.lane.b32.xlu0 %v682, 108
      %v802 = vpop.permute.xlu0 %801
      %803 = vrot.lane.b32.xlu0 %v698, 108
      %v804 = vpop.permute.xlu0 %803
      %805 = vrot.lane.b32.xlu0 %v694, 108
      %v806 = vpop.permute.xlu0 %805
      %807 = vrot.lane.b32.xlu0 %v684, 108
      %v808 = vpop.permute.xlu0 %807
      %809 = vrot.lane.b32.xlu0 %v701, 108
      %v810 = vpop.permute.xlu0 %809
      %vm811 = vcmask 883712
      %v812 = vsel %vm811, %v800, %v802
      %v813 = vsel %vm811, %v802, %v804
      %v814 = vsel %vm811, %v806, %v808
      %v815 = vsel %vm811, %v808, %v810
      %822 = vrot.lane.b32.xlu0 %v691, 92
      %v823 = vpop.permute.xlu0 %822
      %824 = vrot.lane.b32.xlu0 %v682, 92
      %v825 = vpop.permute.xlu0 %824
      %826 = vrot.lane.b32.xlu0 %v698, 92
      %v827 = vpop.permute.xlu0 %826
      %828 = vrot.lane.b32.xlu0 %v694, 92
      %v829 = vpop.permute.xlu0 %828
      %830 = vrot.lane.b32.xlu0 %v684, 92
      %v831 = vpop.permute.xlu0 %830
      %832 = vrot.lane.b32.xlu0 %v701, 92
      %v833 = vpop.permute.xlu0 %832
      %vm834 = vcmask 752640
      %v835 = vsel %vm834, %v823, %v825
      %v836 = vsel %vm834, %v825, %v827
      %v837 = vsel %vm834, %v829, %v831
      %v838 = vsel %vm834, %v831, %v833
      %845 = vrot.lane.b32.xlu0 %v691, 91
      %v846 = vpop.permute.xlu0 %845
      %847 = vrot.lane.b32.xlu0 %v682, 91
      %v848 = vpop.permute.xlu0 %847
      %849 = vrot.lane.b32.xlu0 %v698, 91
      %v850 = vpop.permute.xlu0 %849
      %851 = vrot.lane.b32.xlu0 %v694, 91
      %v852 = vpop.permute.xlu0 %851
      %853 = vrot.lane.b32.xlu0 %v684, 91
      %v854 = vpop.permute.xlu0 %853
      %855 = vrot.lane.b32.xlu0 %v701, 91
      %v856 = vpop.permute.xlu0 %855
      %vm857 = vcmask 744448
      %v858 = vsel %vm857, %v846, %v848
      %v859 = vsel %vm857, %v848, %v850
      %v860 = vsel %vm857, %v852, %v854
      %v861 = vsel %vm857, %v854, %v856
      %868 = vrot.lane.b32.xlu0 %v691, 90
      %v869 = vpop.permute.xlu0 %868
      %870 = vrot.lane.b32.xlu0 %v682, 90
      %v871 = vpop.permute.xlu0 %870
      %872 = vrot.lane.b32.xlu0 %v698, 90
      %v873 = vpop.permute.xlu0 %872
      %874 = vrot.lane.b32.xlu0 %v694, 90
      %v875 = vpop.permute.xlu0 %874
      %876 = vrot.lane.b32.xlu0 %v684, 90
      %v877 = vpop.permute.xlu0 %876
      %878 = vrot.lane.b32.xlu0 %v701, 90
      %v879 = vpop.permute.xlu0 %878
      %vm880 = vcmask 736256
      %v881 = vsel %vm880, %v869, %v871
      %v882 = vsel %vm880, %v871, %v873
      %v883 = vsel %vm880, %v875, %v877
      %v884 = vsel %vm880, %v877, %v879
      %v891 = vld [vmem:[%s5] sm:$0xff]
      %v892 = vld [vmem:[%s5 + $0x8] sm:$0xf]
      %v893 = vld [vmem:[%s5 + $0xc] sm:$0xff]
      %v894 = vld [vmem:[%s5 + $0x14] sm:$0xf]
      %v895 = vld [vmem:[%s5 + $0x18] sm:$0xff]
      %v896 = vld [vmem:[%s5 + $0x20] sm:$0xf]
      %v897 = vld [vmem:[%s5 + $0x24] sm:$0xff]
      %v898 = vld [vmem:[%s5 + $0x2c] sm:$0xf]
      %v907 = vunpack.c.l.b16 %v891
      %v908 = vunpack.c.h.b16 %v891
      %v909 = vunpack.c.l.b16 %v892
      %v910 = vunpack.c.l.b16 %v893
      %v911 = vunpack.c.h.b16 %v893
      %v912 = vunpack.c.l.b16 %v894
      %v913 = vunpack.c.l.b16 %v895
      %v914 = vunpack.c.h.b16 %v895
      %v915 = vunpack.c.l.b16 %v896
      %v916 = vunpack.c.l.b16 %v897
      %v917 = vunpack.c.h.b16 %v897
      %v918 = vunpack.c.l.b16 %v898
      %v919 = vpack.c.b16 %v910, %v907
      %v920 = vpack.c.b16 %v911, %v908
      %v921 = vpack.c.b16 %v912, %v909
      %v922 = vpack.c.b16 %v916, %v913
      %v923 = vpack.c.b16 %v917, %v914
      %v924 = vpack.c.b16 %v918, %v915
      %vm929 = vcmask 261120
      %v931 = vsel %vm929, %v921, 0
      %v934 = vsel %vm929, %v924, 0
      %936 = vmatprep.subr.bf16.mxu0 %v769
      %937 = vmatpush1.bf16.msra.mxu0 %v768
      %938 = vmatprep.subr.bf16.mxu0 %v767
      %939 = vmatpush1.bf16.msra.mxu0 %v766
      %940 = vmatprep.subr.bf16.mxu0 %v746
      %941 = vmatpush1.bf16.msra.mxu0 %v745
      %942 = vmatprep.subr.bf16.mxu0 %v744
      %943 = vmatpush1.bf16.msra.mxu0 %v743
      %944 = vmatprep.subr.bf16.mxu0 %v723
      %945 = vmatpush1.bf16.msra.mxu0 %v722
      %946 = vmatprep.subr.bf16.mxu0 %v721
      %947 = vmatpush1.bf16.msra.mxu0 %v720
      %948 = vmatprep.subr.bf16.mxu0 %v684
      %949 = vmatpush1.bf16.msra.mxu0 %v694
      %950 = vmatprep.subr.bf16.mxu0 %v682
      %951 = vmatpush1.bf16.msra.mxu0 %v691
      %952 = vmatprep.subr.bf16.mxu0 %v861
      %953 = vmatpush2.bf16.msra.mxu0 %v860
      %954 = vmatprep.subr.bf16.mxu0 %v859
      %955 = vmatpush2.bf16.msra.mxu0 %v858
      %956 = vmatprep.subr.bf16.mxu0 %v838
      %957 = vmatpush2.bf16.msra.mxu0 %v837
      %958 = vmatprep.subr.bf16.mxu0 %v836
      %959 = vmatpush2.bf16.msra.mxu0 %v835
      %960 = vmatprep.subr.bf16.mxu0 %v815
      %961 = vmatpush2.bf16.msra.mxu0 %v814
      %962 = vmatprep.subr.bf16.mxu0 %v813
      %963 = vmatpush2.bf16.msra.mxu0 %v812
      %964 = vmatprep.subr.bf16.mxu0 %v792
      %965 = vmatpush2.bf16.msra.mxu0 %v791
      %966 = vmatprep.subr.bf16.mxu0 %v790
      %967 = vmatpush2.bf16.msra.mxu0 %v789
      %968 = vmatprep.mubr.bf16.mxu0 %v920
      %969 = vmatmul.mubr.bf16.gmra.mxu0 %v919
      %v970 = vpop.f32.mrf.mxu0
      %v971 = vadd.f32 0.0, %v970
      %v972 = vpop.f32.mrf.mxu0
      %v973 = vadd.f32 0.0, %v972
      %v974 = vpop.f32.mrf.mxu0
      %v975 = vadd.f32 0.0, %v974
      %v976 = vpop.f32.mrf.mxu0
      %v977 = vadd.f32 0.0, %v976
      %978 = vmatprep.mubr.bf16.mxu0 %v923
      %979 = vmatmul.mubr.bf16.gmra.mxu0 %v922
      %v980 = vpop.f32.mrf.mxu0
      %v981 = vadd.f32 0.0, %v980
      %v982 = vpop.f32.mrf.mxu0
      %v983 = vadd.f32 0.0, %v982
      %v984 = vpop.f32.mrf.mxu0
      %v985 = vadd.f32 0.0, %v984
      %v986 = vpop.f32.mrf.mxu0
      %v987 = vadd.f32 0.0, %v986
      %988 = vdwg.mxu0
      %989 = vmatprep.subr.bf16.mxu0 0
      %990 = vmatpush1.bf16.msra.mxu0 0
      %991 = vmatprep.subr.bf16.mxu0 0
      %992 = vmatpush1.bf16.msra.mxu0 0
      %993 = vmatprep.subr.bf16.mxu0 0
      %994 = vmatpush1.bf16.msra.mxu0 0
      %995 = vmatprep.subr.bf16.mxu0 0
      %996 = vmatpush1.bf16.msra.mxu0 0
      %997 = vmatprep.subr.bf16.mxu0 0
      %998 = vmatpush1.bf16.msra.mxu0 0
      %999 = vmatprep.subr.bf16.mxu0 0
      %1000 = vmatpush1.bf16.msra.mxu0 0
      %1001 = vmatprep.subr.bf16.mxu0 %v884
      %1002 = vmatpush1.bf16.msra.mxu0 %v883
      %1003 = vmatprep.subr.bf16.mxu0 %v882
      %1004 = vmatpush1.bf16.msra.mxu0 %v881
      %1005 = vmatprep.subr.bf16.mxu0 0
      %1006 = vmatpush2.bf16.msra.mxu0 0
      %1007 = vmatprep.subr.bf16.mxu0 0
      %1008 = vmatpush2.bf16.msra.mxu0 0
      %1009 = vmatprep.subr.bf16.mxu0 0
      %1010 = vmatpush2.bf16.msra.mxu0 0
      %1011 = vmatprep.subr.bf16.mxu0 0
      %1012 = vmatpush2.bf16.msra.mxu0 0
      %1013 = vmatprep.subr.bf16.mxu0 0
      %1014 = vmatpush2.bf16.msra.mxu0 0
      %1015 = vmatprep.subr.bf16.mxu0 0
      %1016 = vmatpush2.bf16.msra.mxu0 0
      %1017 = vmatprep.subr.bf16.mxu0 0
      %1018 = vmatpush2.bf16.msra.mxu0 0
      %1019 = vmatprep.subr.bf16.mxu0 0
      %1020 = vmatpush2.bf16.msra.mxu0 0
      %1021 = vmatprep.mubr.bf16.mxu0 0
      %1022 = vmatmul.mubr.bf16.gmra.mxu0 %v931
      %v1023 = vpop.f32.mrf.mxu0
      %v1024 = vadd.f32 %v971, %v1023
      %v1025 = vpop.f32.mrf.mxu0
      %v1026 = vadd.f32 %v973, %v1025
      %v1027 = vpop.f32.mrf.mxu0
      %v1028 = vadd.f32 %v975, %v1027
      %v1029 = vpop.f32.mrf.mxu0
      %v1030 = vadd.f32 %v977, %v1029
      %1031 = vmatprep.mubr.bf16.mxu0 0
      %1032 = vmatmul.mubr.bf16.gmra.mxu0 %v934
      %v1033 = vpop.f32.mrf.mxu0
      %v1034 = vadd.f32 %v981, %v1033
      %v1035 = vpop.f32.mrf.mxu0
      %v1036 = vadd.f32 %v983, %v1035
      %v1037 = vpop.f32.mrf.mxu0
      %v1038 = vadd.f32 %v985, %v1037
      %v1039 = vpop.f32.mrf.mxu0
      %v1040 = vadd.f32 %v987, %v1039
      %1041 = vdwg.mxu0
      %1042 = vmatprep.subr.bf16.mxu0 0
      %1043 = vmatpush1.bf16.msra.mxu0 %v764
      %1044 = vmatprep.subr.bf16.mxu0 0
      %1045 = vmatpush1.bf16.msra.mxu0 %v758
      %1046 = vmatprep.subr.bf16.mxu0 0
      %1047 = vmatpush1.bf16.msra.mxu0 %v741
      %1048 = vmatprep.subr.bf16.mxu0 0
      %1049 = vmatpush1.bf16.msra.mxu0 %v735
      %1050 = vmatprep.subr.bf16.mxu0 0
      %1051 = vmatpush1.bf16.msra.mxu0 %v718
      %1052 = vmatprep.subr.bf16.mxu0 0
      %1053 = vmatpush1.bf16.msra.mxu0 %v712
      %1054 = vmatprep.subr.bf16.mxu0 0
      %1055 = vmatpush1.bf16.msra.mxu0 %v701
      %1056 = vmatprep.subr.bf16.mxu0 0
      %1057 = vmatpush1.bf16.msra.mxu0 %v698
      %1058 = vmatprep.subr.bf16.mxu0 0
      %1059 = vmatpush2.bf16.msra.mxu0 %v856
      %1060 = vmatprep.subr.bf16.mxu0 0
      %1061 = vmatpush2.bf16.msra.mxu0 %v850
      %1062 = vmatprep.subr.bf16.mxu0 0
      %1063 = vmatpush2.bf16.msra.mxu0 %v833
      %1064 = vmatprep.subr.bf16.mxu0 0
      %1065 = vmatpush2.bf16.msra.mxu0 %v827
      %1066 = vmatprep.subr.bf16.mxu0 0
      %1067 = vmatpush2.bf16.msra.mxu0 %v810
      %1068 = vmatprep.subr.bf16.mxu0 0
      %1069 = vmatpush2.bf16.msra.mxu0 %v804
      %1070 = vmatprep.subr.bf16.mxu0 0
      %1071 = vmatpush2.bf16.msra.mxu0 %v787
      %1072 = vmatprep.subr.bf16.mxu0 0
      %1073 = vmatpush2.bf16.msra.mxu0 %v781
      %1074 = vmatprep.mubr.bf16.mxu0 %v920
      %1075 = vmatmul.mubr.bf16.gmra.mxu0 %v919
      %v1076 = vpop.f32.mrf.mxu0
      %v1077 = vadd.f32 0.0, %v1076
      %v1078 = vpop.f32.mrf.mxu0
      %v1079 = vpop.f32.mrf.mxu0
      %v1080 = vadd.f32 0.0, %v1079
      %v1081 = vpop.f32.mrf.mxu0
      %1082 = vmatprep.mubr.bf16.mxu0 %v923
      %1083 = vmatmul.mubr.bf16.gmra.mxu0 %v922
      %v1084 = vpop.f32.mrf.mxu0
      %v1085 = vadd.f32 0.0, %v1084
      %v1086 = vpop.f32.mrf.mxu0
      %v1087 = vpop.f32.mrf.mxu0
      %v1088 = vadd.f32 0.0, %v1087
      %v1089 = vpop.f32.mrf.mxu0
      %1090 = vdwg.mxu0
      %1091 = vmatprep.subr.bf16.mxu0 0
      %1092 = vmatpush1.bf16.msra.mxu0 0
      %1093 = vmatprep.subr.bf16.mxu0 0
      %1094 = vmatpush1.bf16.msra.mxu0 0
      %1095 = vmatprep.subr.bf16.mxu0 0
      %1096 = vmatpush1.bf16.msra.mxu0 0
      %1097 = vmatprep.subr.bf16.mxu0 0
      %1098 = vmatpush1.bf16.msra.mxu0 0
      %1099 = vmatprep.subr.bf16.mxu0 0
      %1100 = vmatpush1.bf16.msra.mxu0 0
      %1101 = vmatprep.subr.bf16.mxu0 0
      %1102 = vmatpush1.bf16.msra.mxu0 0
      %1103 = vmatprep.subr.bf16.mxu0 0
      %1104 = vmatpush1.bf16.msra.mxu0 %v879
      %1105 = vmatprep.subr.bf16.mxu0 0
      %1106 = vmatpush1.bf16.msra.mxu0 %v873
      %1107 = vmatprep.subr.bf16.mxu0 0
      %1108 = vmatpush2.bf16.msra.mxu0 0
      %1109 = vmatprep.subr.bf16.mxu0 0
      %1110 = vmatpush2.bf16.msra.mxu0 0
      %1111 = vmatprep.subr.bf16.mxu0 0
      %1112 = vmatpush2.bf16.msra.mxu0 0
      %1113 = vmatprep.subr.bf16.mxu0 0
      %1114 = vmatpush2.bf16.msra.mxu0 0
      %1115 = vmatprep.subr.bf16.mxu0 0
      %1116 = vmatpush2.bf16.msra.mxu0 0
      %1117 = vmatprep.subr.bf16.mxu0 0
      %1118 = vmatpush2.bf16.msra.mxu0 0
      %1119 = vmatprep.subr.bf16.mxu0 0
      %1120 = vmatpush2.bf16.msra.mxu0 0
      %1121 = vmatprep.subr.bf16.mxu0 0
      %1122 = vmatpush2.bf16.msra.mxu0 0
      %1123 = vmatprep.mubr.bf16.mxu0 0
      %1124 = vmatmul.mubr.bf16.gmra.mxu0 %v931
      %v1125 = vpop.f32.mrf.mxu0
      %v1126 = vadd.f32 %v1077, %v1125
      %v1127 = vpop.f32.mrf.mxu0
      %v1128 = vpop.f32.mrf.mxu0
      %v1129 = vadd.f32 %v1080, %v1128
      %v1130 = vpop.f32.mrf.mxu0
      %1131 = vmatprep.mubr.bf16.mxu0 0
      %1132 = vmatmul.mubr.bf16.gmra.mxu0 %v934
      %v1133 = vpop.f32.mrf.mxu0
      %v1134 = vadd.f32 %v1085, %v1133
      %v1135 = vpop.f32.mrf.mxu0
      %v1136 = vpop.f32.mrf.mxu0
      %v1137 = vadd.f32 %v1088, %v1136
      %v1138 = vpop.f32.mrf.mxu0
      %1139 = vdwg.mxu0
      %v1140 = vld [vmem:[%s6] sm:$0xff]
      %v1141 = vld [vmem:[%s6 + $0x8] sm:$0xff]
      %v1142 = vld [vmem:[%s6 + $0x10] sm:$0xff]
      %v1143 = vld [vmem:[%s6 + $0x18] sm:$0xff]
      %1145 = vset.pattern.permute.xlu0 0
      %1146 = vperm.xlu0 %1145, %v1140
      %v1147 = vpop.permute.xlu0 %1146
      %1150 = vset.pattern.permute.xlu0 0
      %1151 = vperm.xlu0 %1150, %v1141
      %v1152 = vpop.permute.xlu0 %1151
      %1155 = vset.pattern.permute.xlu0 0
      %1156 = vperm.xlu0 %1155, %v1142
      %v1157 = vpop.permute.xlu0 %1156
      %1160 = vset.pattern.permute.xlu0 0
      %1161 = vperm.xlu0 %1160, %v1143
      %v1162 = vpop.permute.xlu0 %1161
      %v1164 = vmul.f32 %v1024, %v1147
      %v1165 = vmul.f32 %v1026, %v1147
      %v1166 = vmul.f32 %v1126, %v1147
      %v1167 = vmul.f32 %v1028, %v1152
      %v1168 = vmul.f32 %v1030, %v1152
      %v1169 = vmul.f32 %v1129, %v1152
      %v1170 = vmul.f32 %v1034, %v1157
      %v1171 = vmul.f32 %v1036, %v1157
      %v1172 = vmul.f32 %v1134, %v1157
      %v1173 = vmul.f32 %v1038, %v1162
      %v1174 = vmul.f32 %v1040, %v1162
      %v1175 = vmul.f32 %v1137, %v1162
      %v1176 = vld [vmem:[%s7] sm:$0xff]
      %v1177 = vld [vmem:[%s7 + $0x8] sm:$0xff]
      %v1178 = vld [vmem:[%s7 + $0x10] sm:$0xff]
      %v1179 = vld [vmem:[%s7 + $0x18] sm:$0xff]
      %1181 = vset.pattern.permute.xlu0 0
      %1182 = vperm.xlu0 %1181, %v1176
      %v1183 = vpop.permute.xlu0 %1182
      %1186 = vset.pattern.permute.xlu0 0
      %1187 = vperm.xlu0 %1186, %v1177
      %v1188 = vpop.permute.xlu0 %1187
      %1191 = vset.pattern.permute.xlu0 0
      %1192 = vperm.xlu0 %1191, %v1178
      %v1193 = vpop.permute.xlu0 %1192
      %1196 = vset.pattern.permute.xlu0 0
      %1197 = vperm.xlu0 %1196, %v1179
      %v1198 = vpop.permute.xlu0 %1197
      %v1200 = vadd.f32 %v1164, %v1183
      %v1201 = vadd.f32 %v1165, %v1183
      %v1202 = vadd.f32 %v1166, %v1183
      %v1203 = vadd.f32 %v1167, %v1188
      %v1204 = vadd.f32 %v1168, %v1188
      %v1205 = vadd.f32 %v1169, %v1188
      %v1206 = vadd.f32 %v1170, %v1193
      %v1207 = vadd.f32 %v1171, %v1193
      %v1208 = vadd.f32 %v1172, %v1193
      %v1209 = vadd.f32 %v1173, %v1198
      %v1210 = vadd.f32 %v1174, %v1198
      %v1211 = vadd.f32 %v1175, %v1198
      %v1212 = vmax.f32 %v1200, 0.0
      %v1213 = vmax.f32 %v1201, 0.0
      %v1214 = vmax.f32 %v1202, 0.0
      %v1215 = vmax.f32 %v1203, 0.0
      %v1216 = vmax.f32 %v1204, 0.0
      %v1217 = vmax.f32 %v1205, 0.0
      %v1218 = vmax.f32 %v1206, 0.0
      %v1219 = vmax.f32 %v1207, 0.0
      %v1220 = vmax.f32 %v1208, 0.0
      %v1221 = vmax.f32 %v1209, 0.0
      %v1222 = vmax.f32 %v1210, 0.0
      %v1223 = vmax.f32 %v1211, 0.0
      %v1224 = vld [vmem:[%s8] sm:$0x3]
      %v1225 = vpack.c.bf16 %v1215, %v1212
      %v1226 = vpack.c.bf16 %v1216, %v1213
      %v1227 = vpack.c.bf16 %v1217, %v1214
      %v1228 = vpack.c.bf16 %v1221, %v1218
      %v1229 = vpack.c.bf16 %v1222, %v1219
      %v1230 = vpack.c.bf16 %v1223, %v1220
      %v1231 = vld [vmem:[%s9] sm:$0x7]
      %1233 = vset.pattern.permute.xlu0 0
      %1234 = vperm.xlu0 %1233, %v1231
      %v1235 = vpop.permute.xlu0 %1234
      %v1238 = vsel %vm929, %v1224, 0
      %1240 = vmatprep.subr.bf16.mxu0 0
      %1241 = vmatpush1.bf16.msra.mxu0 0
      %1242 = vmatprep.subr.bf16.mxu0 0
      %1243 = vmatpush1.bf16.msra.mxu0 0
      %1244 = vmatprep.subr.bf16.mxu0 0
      %1245 = vmatpush1.bf16.msra.mxu0 0
      %1246 = vmatprep.subr.bf16.mxu0 0
      %1247 = vmatpush1.bf16.msra.mxu0 0
      %1248 = vmatprep.subr.bf16.mxu0 0
      %1249 = vmatpush1.bf16.msra.mxu0 0
      %1250 = vmatprep.subr.bf16.mxu0 0
      %1251 = vmatpush1.bf16.msra.mxu0 0
      %1252 = vmatprep.subr.bf16.mxu0 %v1229
      %1253 = vmatpush1.bf16.msra.mxu0 %v1228
      %1254 = vmatprep.subr.bf16.mxu0 %v1226
      %1255 = vmatpush1.bf16.msra.mxu0 %v1225
      %1256 = vmatprep.subr.bf16.mxu0 0
      %1257 = vmatpush2.bf16.msra.mxu0 0
      %1258 = vmatprep.subr.bf16.mxu0 0
      %1259 = vmatpush2.bf16.msra.mxu0 0
      %1260 = vmatprep.subr.bf16.mxu0 0
      %1261 = vmatpush2.bf16.msra.mxu0 0
      %1262 = vmatprep.subr.bf16.mxu0 0
      %1263 = vmatpush2.bf16.msra.mxu0 0
      %1264 = vmatprep.subr.bf16.mxu0 0
      %1265 = vmatpush2.bf16.msra.mxu0 0
      %1266 = vmatprep.subr.bf16.mxu0 0
      %1267 = vmatpush2.bf16.msra.mxu0 0
      %1268 = vmatprep.subr.bf16.mxu0 0
      %1269 = vmatpush2.bf16.msra.mxu0 0
      %1270 = vmatprep.subr.bf16.mxu0 0
      %1271 = vmatpush2.bf16.msra.mxu0 0
      %1272 = vmatprep.mubr.bf16.mxu0 0
      %1273 = vmatmul.mubr.bf16.gmra.mxu0 %v1238
      %v1274 = vpop.f32.mrf.mxu0
      %v1275 = vadd.f32 %v1235, %v1274
      %v1276 = vpop.f32.mrf.mxu0
      %v1277 = vadd.f32 %v1235, %v1276
      %v1278 = vpop.f32.mrf.mxu0
      %v1279 = vpop.f32.mrf.mxu0
      %1280 = vdwg.mxu0
      %1281 = vmatprep.subr.bf16.mxu0 0
      %1282 = vmatpush1.bf16.msra.mxu0 0
      %1283 = vmatprep.subr.bf16.mxu0 0
      %1284 = vmatpush1.bf16.msra.mxu0 0
      %1285 = vmatprep.subr.bf16.mxu0 0
      %1286 = vmatpush1.bf16.msra.mxu0 0
      %1287 = vmatprep.subr.bf16.mxu0 0
      %1288 = vmatpush1.bf16.msra.mxu0 0
      %1289 = vmatprep.subr.bf16.mxu0 0
      %1290 = vmatpush1.bf16.msra.mxu0 0
      %1291 = vmatprep.subr.bf16.mxu0 0
      %1292 = vmatpush1.bf16.msra.mxu0 0
      %1293 = vmatprep.subr.bf16.mxu0 0
      %1294 = vmatpush1.bf16.msra.mxu0 %v1230
      %1295 = vmatprep.subr.bf16.mxu0 0
      %1296 = vmatpush1.bf16.msra.mxu0 %v1227
      %1297 = vmatprep.subr.bf16.mxu0 0
      %1298 = vmatpush2.bf16.msra.mxu0 0
      %1299 = vmatprep.subr.bf16.mxu0 0
      %1300 = vmatpush2.bf16.msra.mxu0 0
      %1301 = vmatprep.subr.bf16.mxu0 0
      %1302 = vmatpush2.bf16.msra.mxu0 0
      %1303 = vmatprep.subr.bf16.mxu0 0
      %1304 = vmatpush2.bf16.msra.mxu0 0
      %1305 = vmatprep.subr.bf16.mxu0 0
      %1306 = vmatpush2.bf16.msra.mxu0 0
      %1307 = vmatprep.subr.bf16.mxu0 0
      %1308 = vmatpush2.bf16.msra.mxu0 0
      %1309 = vmatprep.subr.bf16.mxu0 0
      %1310 = vmatpush2.bf16.msra.mxu0 0
      %1311 = vmatprep.subr.bf16.mxu0 0
      %1312 = vmatpush2.bf16.msra.mxu0 0
      %1313 = vmatprep.mubr.bf16.mxu0 0
      %1314 = vmatmul.mubr.bf16.gmra.mxu0 %v1238
      %v1315 = vpop.f32.mrf.mxu0
      %v1316 = vadd.f32 %v1235, %v1315
      %v1317 = vpop.f32.mrf.mxu0
      %v1318 = vpop.f32.mrf.mxu0
      %v1319 = vpop.f32.mrf.mxu0
      %1320 = vdwg.mxu0
      %v1324 = vrot.slane %v1275, 1
      %v1325 = vrot.slane %v1277, 1
      %v1326 = vrot.slane %v1316, 1
      %v1330 = vmax.f32 %v1275, %v1324
      %v1331 = vmax.f32 %v1277, %v1325
      %v1332 = vmax.f32 %v1316, %v1326
      %v1333 = vrot.slane %v1275, 2
      %v1334 = vrot.slane %v1277, 2
      %v1335 = vrot.slane %v1316, 2
      %v1339 = vmax.f32 %v1330, %v1333
      %v1340 = vmax.f32 %v1331, %v1334
      %v1341 = vmax.f32 %v1332, %v1335
      %v1342 = vlaneseq
      %v1343 = vshrl.u32 %v1342, 7
      %v1344 = vsub.s32 0, %v1343
      %v1345 = vrot.slane %v1339, %v1344
      %v1346 = vlaneseq
      %v1347 = vshrl.u32 %v1346, 7
      %v1348 = vsub.s32 0, %v1347
      %v1349 = vrot.slane %v1340, %v1348
      %v1350 = vlaneseq
      %v1351 = vshrl.u32 %v1350, 7
      %v1352 = vsub.s32 0, %v1351
      %v1353 = vrot.slane %v1341, %v1352
      %v1354 = vsub.f32 %v1275, %v1345
      %v1355 = vsub.f32 %v1277, %v1349
      %v1356 = vsub.f32 %v1316, %v1353
      %v1357 = vmul.f32 %v1354, 1.442695
      %v1358 = vpow.pop %v1357
      %v1359 = vmul.f32 %v1355, 1.442695
      %v1360 = vpow.pop %v1359
      %v1361 = vmul.f32 %v1356, 1.442695
      %v1362 = vpow.pop %v1361
      %v1366 = vrot.slane %v1358, 1
      %v1367 = vrot.slane %v1360, 1
      %v1368 = vrot.slane %v1362, 1
      %v1372 = vadd.f32 %v1358, %v1366
      %v1373 = vadd.f32 %v1360, %v1367
      %v1374 = vadd.f32 %v1362, %v1368
      %v1375 = vrot.slane %v1358, 2
      %v1376 = vrot.slane %v1360, 2
      %v1377 = vrot.slane %v1362, 2
      %v1381 = vadd.f32 %v1372, %v1375
      %v1382 = vadd.f32 %v1373, %v1376
      %v1383 = vadd.f32 %v1374, %v1377
      %v1384 = vrcp.pop %v1381
      %v1385 = vrcp.pop %v1382
      %v1386 = vrcp.pop %v1383
      %v1387 = vlaneseq
      %v1388 = vshrl.u32 %v1387, 7
      %v1389 = vsub.s32 0, %v1388
      %v1390 = vrot.slane %v1384, %v1389
      %v1391 = vlaneseq
      %v1392 = vshrl.u32 %v1391, 7
      %v1393 = vsub.s32 0, %v1392
      %v1394 = vrot.slane %v1385, %v1393
      %v1395 = vlaneseq
      %v1396 = vshrl.u32 %v1395, 7
      %v1397 = vsub.s32 0, %v1396
      %v1398 = vrot.slane %v1386, %v1397
      %v1399 = vmul.f32 %v1358, %v1390
      %v1400 = vmul.f32 %v1360, %v1394
      %v1401 = vmul.f32 %v1362, %v1398
      %v1404 = vcombine.low %v1399, %v1400
      %1406 = vst [vmem:[%s359] sm:$0x77] %v1404
      %vm1407 = vcmask 550912
      %1408 = vst.msk [vmem:[%s359 + $0x8] sm:$0x7] %vm1407, %v1401
      %p1409 = scmp.lt.s32.totalorder %s21, 1
      %s1410 = scalar_select %p1409, %s21, 1
      %s1411 = smul.addr %s1410, 3
      %s1412 = smul.addr %s1411, 4
      %s1413 = scalar_lea.vmem %s10, %s1412
      // Predicated region
      $region61: #{tpu_custom_call.1} parent=59 // pred_check
        %p1414 = pneg %p254
      $region62: #{tpu_custom_call.1} parent=59 // pred_check_branch
        %1416 = sbr.rel (%p1414) target = $region64
      $region63: #{tpu_custom_call.1} parent=59 // pred_region
        _
      $region64: #{tpu_custom_call.1} parent=59 // pred_fallthru
        _
    $region60: #{tpu_custom_call.1} parent=5 // pred_fallthru
      _
    %p1417 = scmp.le.s32.totalorder 2, %s16
    // Predicated region
    $region65: #{tpu_custom_call.1} parent=5 // pred_check
      %p1418 = pneg %p1417
    $region66: #{tpu_custom_call.1} parent=5 // pred_check_branch
      %1420 = sbr.rel (%p1418) target = $region68
    $region67: #{tpu_custom_call.1} parent=5 // pred_region
      %s1421 = ssub.s32 %s16, 2
      // Predicated region
      $region69: #{tpu_custom_call.1} parent=67 // pred_check
        %p1422 = pneg %p260
      $region70: #{tpu_custom_call.1} parent=67 // pred_check_branch
        %1424 = sbr.rel (%p1422) target = $region72
      $region71: #{tpu_custom_call.1} parent=67 // pred_region
        %p1425 = scmp.lt.s32.totalorder %s22, 1
        %s1426 = scalar_select %p1425, %s22, 1
        %s1427 = smul.addr %s1426, 3
        %s1428 = smul.addr %s1427, 4
        %s1429 = scalar_lea.vmem %s10, %s1428
      $region72: #{tpu_custom_call.1} parent=67 // pred_fallthru
        _
    $region68: #{tpu_custom_call.1} parent=5 // pred_fallthru
      _
  $region6: #{tpu_custom_call.1} parent=0 // loop_footer
    %s20 = sadd.s32 1, %s16
  $region7: #{tpu_custom_call.1} parent=0 // loop_footer_branch
    %15 = sbr.rel target = $region3
  $region8: #{tpu_custom_call.1} parent=0 // loop_exit
    _

</llo_original>
